<compile_context>
chip_gen: v7x
topology: tpu7x:2x2x1
jax: 0.10.0
libtpu: 0.0.40
codegen_flags: <defaults>
</compile_context>

<pallas_src>
import functools

import jax
import jax.numpy as jnp
from jax import lax
from jax.experimental import pallas as pl
from jax.experimental.pallas import tpu as pltpu


# ----------------------------------------------------------------------------
# Pallas kernels
# ----------------------------------------------------------------------------
def _gemm_bias_act_kernel(*refs, relu, has_residual):
    """out = (A.bf16 @ W.bf16) + bias [relu] [+ residual], f32 accumulation."""
    if has_residual:
        a_ref, w_ref, b_ref, r_ref, o_ref = refs
    else:
        a_ref, w_ref, b_ref, o_ref = refs
    acc = jnp.dot(a_ref[...].astype(jnp.bfloat16), w_ref[...],
                  preferred_element_type=jnp.float32)
    acc = acc + b_ref[...]
    if relu:
        acc = jnp.maximum(acc, 0.0)
    if has_residual:
        acc = acc + r_ref[...]
    o_ref[...] = acc.astype(o_ref.dtype)


def conv1x1_nhwc(x, w, b, relu=False, residual=None):
    """1x1 conv on NHWC activations as a single Pallas GEMM.

    x: (N, H, W, Cin) f32   w: (Cin, Cout) bf16   b: (Cout,) f32 or None
    residual: optional (N, H, W, Cout) f32 added after bias (SK_RDB fusion).
    """
    # Epilogue order is bias -> ReLU -> residual; the module never uses both.
    assert not (relu and residual is not None), "relu+residual ordering not supported"
    N, H, W, Cin = x.shape
    Cout = w.shape[1]
    M = N * H * W
    a = x.reshape(M, Cin)                                    # contiguous -> zero-copy
    bias = (b if b is not None else jnp.zeros((Cout,), jnp.float32))
    bias = bias.reshape(1, Cout).astype(jnp.float32)

    # Bigger M-tiles amortize the ~0.35us/step overhead; keep >=2 grid steps at
    # small M so both v7x TensorCores get work and the pipeline can overlap DMA.
    if M <= 256:
        TM = M
    elif M <= 4096:
        TM = 256
    else:
        TM = 512
    grid = (pl.cdiv(M, TM),)

    in_specs = [
        pl.BlockSpec((TM, Cin), lambda i: (i, 0)),
        pl.BlockSpec((Cin, Cout), lambda i: (0, 0)),         # resident weight
        pl.BlockSpec((1, Cout), lambda i: (0, 0)),           # resident bias
    ]
    args = [a, w, bias]
    if residual is not None:
        in_specs.append(pl.BlockSpec((TM, Cout), lambda i: (i, 0)))
        args.append(residual.reshape(M, Cout))

    out = pl.pallas_call(
        functools.partial(_gemm_bias_act_kernel, relu=relu,
                          has_residual=residual is not None),
        out_shape=jax.ShapeDtypeStruct((M, Cout), jnp.float32),
        grid_spec=pltpu.PrefetchScalarGridSpec(
            num_scalar_prefetch=0,
            grid=grid,
            in_specs=in_specs,
            out_specs=pl.BlockSpec((TM, Cout), lambda i: (i, 0)),
        ),
        compiler_params=pltpu.CompilerParams(dimension_semantics=("parallel",)),
    )(*args)
    return out.reshape(N, H, W, Cout)


def _conv3x3_kernel(x_ref, w_ref, b_ref, o_ref, xpad_ref, lhs_ref, *, TH, relu):
    """Row-blocked, K-folded 3x3 'same' conv for one (batch, row-block) step.

    x_ref:    (1, H, W, Cin) f32  whole image, resident across the hb grid axis
    w_ref:    (9*Cin, Cout)  bf16 folded weights (tap-major), resident
    b_ref:    (1, Cout)      f32  bias, resident
    o_ref:    (1, TH, W, Cout) f32 output row-block
    xpad_ref: (H+2, W+2, Cin) bf16 VMEM scratch — in-kernel halo-padded image
    lhs_ref:  (TH, W, 9*Cin)  bf16 VMEM scratch — mini-im2col GEMM operand
    """
    hb = pl.program_id(1)
    _, H, W, Cin = x_ref.shape
    Cout = o_ref.shape[-1]

    # Build the halo-padded image once per batch element (hb == 0); it persists
    # in the scratch across the (sequential, per-core) hb axis.
    @pl.when(hb == 0)
    def _pad():
        xpad_ref[...] = jnp.zeros(xpad_ref.shape, xpad_ref.dtype)
        xpad_ref[1:H + 1, 1:W + 1, :] = x_ref[0].astype(xpad_ref.dtype)

    h0 = pl.multiple_of(hb * TH, TH)
    rows = xpad_ref[pl.ds(h0, TH + 2), :, :]                 # (TH+2, W+2, Cin)

    # Mini im2col: 9 shifted windows laid out contiguously along K.
    for di in range(3):
        for dj in range(3):
            t = di * 3 + dj
            lhs_ref[:, :, t * Cin:(t + 1) * Cin] = rows[di:di + TH, dj:dj + W, :]

    # Single M=TH*W, K=9*Cin GEMM (bf16 inputs, f32 accumulation) + f32 epilogue.
    acc = jnp.dot(lhs_ref[...].reshape(TH * W, 9 * Cin), w_ref[...],
                  preferred_element_type=jnp.float32)
    acc = acc + b_ref[...]
    if relu:
        acc = jnp.maximum(acc, 0.0)
    o_ref[...] = acc.reshape(1, TH, W, Cout).astype(o_ref.dtype)


def conv3x3_nhwc(x, w_fold, b, relu=False):
    """3x3 stride-1 'same' conv on NHWC activations.

    x: (N, H, W, Cin) f32   w_fold: (9*Cin, Cout) bf16 with row t*Cin+ci for tap
    t = di*3+dj (== PyTorch weight W[co, ci, di, dj])   b: (Cout,) f32
    """
    N, H, W, Cin = x.shape
    Cout = w_fold.shape[1]
    assert w_fold.shape[0] == 9 * Cin
    TH = next(t for t in (8, 4, 2, 1) if H % t == 0)         # M = TH*W per GEMM
    bias = b.reshape(1, Cout).astype(jnp.float32)
    # TODO(synk): for very large images the resident whole-image block should be
    # replaced by an H-tiled input with an in-kernel halo DMA (memory_space=pl.ANY).
    return pl.pallas_call(
        functools.partial(_conv3x3_kernel, TH=TH, relu=relu),
        out_shape=jax.ShapeDtypeStruct((N, H, W, Cout), jnp.float32),
        grid_spec=pltpu.PrefetchScalarGridSpec(
            num_scalar_prefetch=0,
            grid=(N, H // TH),
            in_specs=[
                pl.BlockSpec((1, H, W, Cin), lambda n, hb: (n, 0, 0, 0)),
                pl.BlockSpec((9 * Cin, Cout), lambda n, hb: (0, 0)),
                pl.BlockSpec((1, Cout), lambda n, hb: (0, 0)),
            ],
            out_specs=pl.BlockSpec((1, TH, W, Cout), lambda n, hb: (n, hb, 0, 0)),
            scratch_shapes=[
                pltpu.VMEM((H + 2, W + 2, Cin), jnp.bfloat16),   # halo-padded image
                pltpu.VMEM((TH, W, 9 * Cin), jnp.bfloat16),      # im2col operand
            ],
        ),
        compiler_params=pltpu.CompilerParams(
            dimension_semantics=("parallel", "arbitrary"),
            vmem_limit_bytes=48 * 1024 * 1024,   # > 16/32 MiB defaults, < v7x 64 MiB
        ),
    )(x, w_fold, bias)


# ----------------------------------------------------------------------------
# Layout glue (plain JAX; negligible cost)
# ----------------------------------------------------------------------------
def pixel_shuffle_nhwc(x, r):
    n, h, w, c = x.shape
    co = c // (r * r)
    x = x.reshape(n, h, w, co, r, r)
    x = x.transpose(0, 1, 4, 2, 5, 3)                        # (N, H, r, W, r, co)
    return x.reshape(n, h * r, w * r, co)


# ----------------------------------------------------------------------------
# Module forwards (functional; params are nested dicts, activations NHWC f32)
# ----------------------------------------------------------------------------
def skff_forward(p, x, x1):
    # No (N, 2, H, W, C) stack: pooled attention in plain JAX (tiny matmuls),
    # output as a broadcast-weighted sum of the two branches.
    n, _, _, c = x.shape
    feats_u = x + x1                                         # (N, H, W, C)
    feats_s = jnp.mean(feats_u, axis=(1, 2))                 # (N, C) global avg-pool
    z = feats_s @ p["w_du"]                                  # (N, d)
    z = jnp.where(z >= 0, z, p["prelu"] * z)                 # PReLU
    att = jax.nn.softmax((z @ p["w_fcs"]).reshape(n, 2, c), axis=1)
    a0 = att[:, 0, :][:, None, None, :]
    a1 = att[:, 1, :][:, None, None, :]
    return a0 * x + a1 * x1


def dense_layer_forward(p, x):
    x1 = conv3x3_nhwc(x, p["conv_w"], p["conv_b"], relu=True)
    return skff_forward(p["sk"], x, x1)


def sk_rdb_forward(p, x):
    res = conv1x1_nhwc(x, p["identity_w"], p["identity_b"])
    for lp in p["layers"]:
        x = dense_layer_forward(lp, x)
    # lff conv with the identity-branch residual fused into the kernel epilogue
    return conv1x1_nhwc(x, p["lff_w"], p["lff_b"], residual=res)


def ps_up_forward(p, x, r=2):
    return conv1x1_nhwc(pixel_shuffle_nhwc(x, r), p["w"], p["b"])


def unet_up_block_forward(p, x_nchw, bridge_nchw):
    """UNetUpBlock.forward(x, bridge); inputs/outputs NCHW to match PyTorch."""
    x = jnp.transpose(x_nchw, (0, 2, 3, 1))                  # -> NHWC once
    bridge = jnp.transpose(bridge_nchw, (0, 2, 3, 1))
    up = ps_up_forward(p["up"], x, r=2)                      # PS_up
    # TODO(synk): splitting the first consumers' K over (up, bridge) would remove
    # this concat's HBM round trip; kept since the first SKFF needs the
    # concatenated features anyway.
    out = jnp.concatenate([up, bridge], axis=-1)             # cat([up, bridge], C)
    out = sk_rdb_forward(p["block"], out)                    # UNetConvBlock(no down)
    return jnp.transpose(out, (0, 3, 1, 2))                  # -> NCHW once


# ----------------------------------------------------------------------------
# Deterministic parameter init (synthetic; stored in GEMM layout, bf16 weights)
# ----------------------------------------------------------------------------
class KeyGen:
    def __init__(self, seed=0):
        self.key = jax.random.PRNGKey(seed)

    def __call__(self):
        self.key, sub = jax.random.split(self.key)
        return sub


def init_conv1x1(kg, cin, cout, bias=True, scale=0.05):
    w = (jax.random.normal(kg(), (cin, cout), jnp.float32) * scale).astype(jnp.bfloat16)
    b = jax.random.normal(kg(), (cout,), jnp.float32) * scale if bias else None
    return w, b


def init_conv3x3(kg, cin, cout, scale=0.05):
    # Folded GEMM layout: row t*cin + ci <-> PyTorch weight W[co, ci, t//3, t%3]
    w = (jax.random.normal(kg(), (9 * cin, cout), jnp.float32) * scale).astype(jnp.bfloat16)
    b = jax.random.normal(kg(), (cout,), jnp.float32) * scale
    return w, b


def init_skff(kg, channels, height=2, reduction=8, scale=0.05):
    d = max(channels // reduction, 4)
    w_du = jax.random.normal(kg(), (channels, d), jnp.float32) * scale
    w_fcs = jax.random.normal(kg(), (d, height * channels), jnp.float32) * scale
    return {"w_du": w_du, "prelu": jnp.float32(0.25), "w_fcs": w_fcs}


def init_dense_layer(kg, channels):
    w, b = init_conv3x3(kg, channels, channels)
    return {"conv_w": w, "conv_b": b, "sk": init_skff(kg, channels, height=2)}


def init_sk_rdb(kg, in_channels, growth_rate, num_layers=3):
    iw, ib = init_conv1x1(kg, in_channels, growth_rate)
    layers = [init_dense_layer(kg, in_channels) for _ in range(num_layers)]
    lw, lb = init_conv1x1(kg, in_channels, growth_rate)
    return {"identity_w": iw, "identity_b": ib, "layers": layers,
            "lff_w": lw, "lff_b": lb}


def init_unet_up_block(kg, in_size, out_size, r=2):
    uw, ub = init_conv1x1(kg, in_size // (r * r), out_size)
    return {"up": {"w": uw, "b": ub},
            "block": init_sk_rdb(kg, in_size, out_size, num_layers=3)}


# ----------------------------------------------------------------------------
# Matching-precision plain-JAX references for in-script sanity checks
# ----------------------------------------------------------------------------
def _conv3x3_ref(x, w_fold, b, relu):
    n, h, w, cin = x.shape
    cout = w_fold.shape[1]
    xp = jnp.pad(x.astype(jnp.bfloat16), ((0, 0), (1, 1), (1, 1), (0, 0)))
    w9 = w_fold.reshape(9, cin, cout)
    acc = jnp.zeros((n, h, w, cout), jnp.float32) + b
    for di in range(3):
        for dj in range(3):
            lhs = xp[:, di:di + h, dj:dj + w, :].reshape(-1, cin)
            acc = acc + lax.dot_general(lhs, w9[di * 3 + dj], (((1,), (0,)), ((), ())),
                                        preferred_element_type=jnp.float32
                                        ).reshape(n, h, w, cout)
    return jnp.maximum(acc, 0.0) if relu else acc


def _conv1x1_ref(x, w, b, relu):
    n, h, wd, cin = x.shape
    acc = lax.dot_general(x.reshape(-1, cin).astype(jnp.bfloat16), w,
                          (((1,), (0,)), ((), ())),
                          preferred_element_type=jnp.float32)
    acc = acc.reshape(n, h, wd, -1) + b
    return jnp.maximum(acc, 0.0) if relu else acc


# ----------------------------------------------------------------------------
if __name__ == "__main__":
    in_size, out_size = 32, 16                 # UNetUpBlock(in_size=32, out_size=16)
    B, Hb, Wb = 2, 16, 16                      # bridge / output spatial size

    kg = KeyGen(0)
    params = init_unet_up_block(kg, in_size, out_size)

    k1, k2 = jax.random.split(jax.random.PRNGKey(0))
    x = jax.random.normal(k1, (B, in_size, Hb // 2, Wb // 2), jnp.float32)   # (2,32,8,8)
    bridge = jax.random.normal(k2, (B, out_size, Hb, Wb), jnp.float32)       # (2,16,16,16)

    # --- kernel-level sanity checks (references use the same bf16 dot inputs) ---
    kg2 = KeyGen(7)
    xt = jax.random.normal(jax.random.PRNGKey(1), (2, 16, 16, 32), jnp.float32)
    w3, b3 = init_conv3x3(kg2, 32, 32)
    got3 = conv3x3_nhwc(xt, w3, b3, relu=True)
    want3 = _conv3x3_ref(xt, w3, b3, True)
    assert float(jnp.max(jnp.abs(got3 - want3))) < 1e-2

    w1, b1 = init_conv1x1(kg2, 32, 16)
    got1 = conv1x1_nhwc(xt, w1, b1, relu=True)
    want1 = _conv1x1_ref(xt, w1, b1, True)
    assert float(jnp.max(jnp.abs(got1 - want1))) < 1e-2

    # --- full UNetUpBlock forward --------------------------------------------
    fwd = jax.jit(unet_up_block_forward)
    out = fwd(params, x, bridge)
    jax.block_until_ready(out)
    assert out.shape == (B, out_size, Hb, Wb)
    assert out.dtype == jnp.float32
    assert bool(jnp.all(jnp.isfinite(out)))
    print("KERNEL_OK")
</pallas_src>

<mosaic_0001>
module attributes {stable_mosaic.version = 11 : i64} {
  func.func @_conv3x3_kernel(%arg0: i32, %arg1: i32, %arg2: memref<1x16x16x32xf32, #tpu.memory_space<vmem>>, %arg3: memref<288x32xbf16, #tpu.memory_space<vmem>>, %arg4: memref<1x32xf32, #tpu.memory_space<vmem>>, %arg5: memref<1x8x16x32xf32, #tpu.memory_space<vmem>>, %arg6: memref<18x18x32xbf16, #tpu.memory_space<vmem>>, %arg7: memref<8x16x288xbf16, #tpu.memory_space<vmem>>) attributes {dimension_semantics = [#tpu.dimension_semantics<parallel>, #tpu.dimension_semantics<arbitrary>], iteration_bounds = array<i64: 2, 2>, scalar_prefetch = 0 : i64, scratch_operands = 2 : i64, tpu.core_type = #tpu.core_type<tc>, window_params = [{transform_indices = @transform_0, window_bounds = array<i64: 1, 16, 16, 32>}, {pipeline_mode = #tpu.pipeline_mode<synchronous>, transform_indices = @transform_1, window_bounds = array<i64: 288, 32>}, {pipeline_mode = #tpu.pipeline_mode<synchronous>, transform_indices = @transform_2, window_bounds = array<i64: 1, 32>}, {transform_indices = @transform_3, window_bounds = array<i64: 1, 8, 16, 32>}]} {
    %c0_i32 = arith.constant 0 : i32
    %0 = arith.cmpi eq, %arg1, %c0_i32 : i32
    %1 = arith.extui %0 : i1 to i32
    %c0_i32_0 = arith.constant 0 : i32
    %2 = arith.cmpi ne, %1, %c0_i32_0 : i32
    scf.if %2 {
      %cst_33 = arith.constant 0.000000e+00 : bf16
      %36 = vector.broadcast %cst_33 : bf16 to vector<18x18x32xbf16>
      %c0_34 = arith.constant 0 : index
      %c0_35 = arith.constant 0 : index
      %c0_36 = arith.constant 0 : index
      %37 = vector.load %arg6[%c0_34, %c0_35, %c0_36] : memref<18x18x32xbf16, #tpu.memory_space<vmem>>, vector<18x18x32xbf16>
      tpu.vector_store %arg6[%c0_34, %c0_35, %c0_36], %36 {strides = array<i32>} : memref<18x18x32xbf16, #tpu.memory_space<vmem>>, vector<18x18x32xbf16>,
      %c0_37 = arith.constant 0 : index
      %c0_38 = arith.constant 0 : index
      %c0_39 = arith.constant 0 : index
      %c0_40 = arith.constant 0 : index
      %38 = vector.load %arg2[%c0_37, %c0_38, %c0_39, %c0_40] : memref<1x16x16x32xf32, #tpu.memory_space<vmem>>, vector<1x16x16x32xf32>
      %39 = vector.shape_cast %38 : vector<1x16x16x32xf32> to vector<16x16x32xf32>
      %40 = arith.truncf %39 : vector<16x16x32xf32> to vector<16x16x32xbf16>
      %c1 = arith.constant 1 : index
      %c1_41 = arith.constant 1 : index
      %c0_42 = arith.constant 0 : index
      %41 = vector.load %arg6[%c1, %c1_41, %c0_42] : memref<18x18x32xbf16, #tpu.memory_space<vmem>>, vector<16x16x32xbf16>
      tpu.vector_store %arg6[%c1, %c1_41, %c0_42], %40 {strides = array<i32>} : memref<18x18x32xbf16, #tpu.memory_space<vmem>>, vector<16x16x32xbf16>,
    } else {
    }
    %c8_i32 = arith.constant 8 : i32
    %3 = arith.muli %arg1, %c8_i32 : i32
    %4 = tpu.assume_multiple %3, 8 : i32
    %5 = arith.index_cast %4 : i32 to index
    %c0 = arith.constant 0 : index
    %c0_1 = arith.constant 0 : index
    %6 = vector.load %arg6[%5, %c0, %c0_1] : memref<18x18x32xbf16, #tpu.memory_space<vmem>>, vector<10x18x32xbf16>
    %7 = vector.extract_strided_slice %6 {offsets = [0, 0, 0], sizes = [8, 16, 32], strides = [1, 1, 1]} : vector<10x18x32xbf16> to vector<8x16x32xbf16>
    %c0_2 = arith.constant 0 : index
    %c0_3 = arith.constant 0 : index
    %c0_4 = arith.constant 0 : index
    %8 = vector.load %arg7[%c0_2, %c0_3, %c0_4] : memref<8x16x288xbf16, #tpu.memory_space<vmem>>, vector<8x16x32xbf16>
    tpu.vector_store %arg7[%c0_2, %c0_3, %c0_4], %7 {strides = array<i32>} : memref<8x16x288xbf16, #tpu.memory_space<vmem>>, vector<8x16x32xbf16>,
    %9 = vector.extract_strided_slice %6 {offsets = [0, 1, 0], sizes = [8, 16, 32], strides = [1, 1, 1]} : vector<10x18x32xbf16> to vector<8x16x32xbf16>
    %c0_5 = arith.constant 0 : index
    %c0_6 = arith.constant 0 : index
    %c32 = arith.constant 32 : index
    %10 = vector.load %arg7[%c0_5, %c0_6, %c32] : memref<8x16x288xbf16, #tpu.memory_space<vmem>>, vector<8x16x32xbf16>
    tpu.vector_store %arg7[%c0_5, %c0_6, %c32], %9 {strides = array<i32>} : memref<8x16x288xbf16, #tpu.memory_space<vmem>>, vector<8x16x32xbf16>,
    %11 = vector.extract_strided_slice %6 {offsets = [0, 2, 0], sizes = [8, 16, 32], strides = [1, 1, 1]} : vector<10x18x32xbf16> to vector<8x16x32xbf16>
    %c0_7 = arith.constant 0 : index
    %c0_8 = arith.constant 0 : index
    %c64 = arith.constant 64 : index
    %12 = vector.load %arg7[%c0_7, %c0_8, %c64] : memref<8x16x288xbf16, #tpu.memory_space<vmem>>, vector<8x16x32xbf16>
    tpu.vector_store %arg7[%c0_7, %c0_8, %c64], %11 {strides = array<i32>} : memref<8x16x288xbf16, #tpu.memory_space<vmem>>, vector<8x16x32xbf16>,
    %13 = vector.extract_strided_slice %6 {offsets = [1, 0, 0], sizes = [8, 16, 32], strides = [1, 1, 1]} : vector<10x18x32xbf16> to vector<8x16x32xbf16>
    %c0_9 = arith.constant 0 : index
    %c0_10 = arith.constant 0 : index
    %c96 = arith.constant 96 : index
    %14 = vector.load %arg7[%c0_9, %c0_10, %c96] : memref<8x16x288xbf16, #tpu.memory_space<vmem>>, vector<8x16x32xbf16>
    tpu.vector_store %arg7[%c0_9, %c0_10, %c96], %13 {strides = array<i32>} : memref<8x16x288xbf16, #tpu.memory_space<vmem>>, vector<8x16x32xbf16>,
    %15 = vector.extract_strided_slice %6 {offsets = [1, 1, 0], sizes = [8, 16, 32], strides = [1, 1, 1]} : vector<10x18x32xbf16> to vector<8x16x32xbf16>
    %c0_11 = arith.constant 0 : index
    %c0_12 = arith.constant 0 : index
    %c128 = arith.constant 128 : index
    %16 = vector.load %arg7[%c0_11, %c0_12, %c128] : memref<8x16x288xbf16, #tpu.memory_space<vmem>>, vector<8x16x32xbf16>
    tpu.vector_store %arg7[%c0_11, %c0_12, %c128], %15 {strides = array<i32>} : memref<8x16x288xbf16, #tpu.memory_space<vmem>>, vector<8x16x32xbf16>,
    %17 = vector.extract_strided_slice %6 {offsets = [1, 2, 0], sizes = [8, 16, 32], strides = [1, 1, 1]} : vector<10x18x32xbf16> to vector<8x16x32xbf16>
    %c0_13 = arith.constant 0 : index
    %c0_14 = arith.constant 0 : index
    %c160 = arith.constant 160 : index
    %18 = vector.load %arg7[%c0_13, %c0_14, %c160] : memref<8x16x288xbf16, #tpu.memory_space<vmem>>, vector<8x16x32xbf16>
    tpu.vector_store %arg7[%c0_13, %c0_14, %c160], %17 {strides = array<i32>} : memref<8x16x288xbf16, #tpu.memory_space<vmem>>, vector<8x16x32xbf16>,
    %19 = vector.extract_strided_slice %6 {offsets = [2, 0, 0], sizes = [8, 16, 32], strides = [1, 1, 1]} : vector<10x18x32xbf16> to vector<8x16x32xbf16>
    %c0_15 = arith.constant 0 : index
    %c0_16 = arith.constant 0 : index
    %c192 = arith.constant 192 : index
    %20 = vector.load %arg7[%c0_15, %c0_16, %c192] : memref<8x16x288xbf16, #tpu.memory_space<vmem>>, vector<8x16x32xbf16>
    tpu.vector_store %arg7[%c0_15, %c0_16, %c192], %19 {strides = array<i32>} : memref<8x16x288xbf16, #tpu.memory_space<vmem>>, vector<8x16x32xbf16>,
    %21 = vector.extract_strided_slice %6 {offsets = [2, 1, 0], sizes = [8, 16, 32], strides = [1, 1, 1]} : vector<10x18x32xbf16> to vector<8x16x32xbf16>
    %c0_17 = arith.constant 0 : index
    %c0_18 = arith.constant 0 : index
    %c224 = arith.constant 224 : index
    %22 = vector.load %arg7[%c0_17, %c0_18, %c224] : memref<8x16x288xbf16, #tpu.memory_space<vmem>>, vector<8x16x32xbf16>
    tpu.vector_store %arg7[%c0_17, %c0_18, %c224], %21 {strides = array<i32>} : memref<8x16x288xbf16, #tpu.memory_space<vmem>>, vector<8x16x32xbf16>,
    %23 = vector.extract_strided_slice %6 {offsets = [2, 2, 0], sizes = [8, 16, 32], strides = [1, 1, 1]} : vector<10x18x32xbf16> to vector<8x16x32xbf16>
    %c0_19 = arith.constant 0 : index
    %c0_20 = arith.constant 0 : index
    %c256 = arith.constant 256 : index
    %24 = vector.load %arg7[%c0_19, %c0_20, %c256] : memref<8x16x288xbf16, #tpu.memory_space<vmem>>, vector<8x16x32xbf16>
    tpu.vector_store %arg7[%c0_19, %c0_20, %c256], %23 {strides = array<i32>} : memref<8x16x288xbf16, #tpu.memory_space<vmem>>, vector<8x16x32xbf16>,
    %c0_21 = arith.constant 0 : index
    %c0_22 = arith.constant 0 : index
    %c0_23 = arith.constant 0 : index
    %25 = vector.load %arg7[%c0_21, %c0_22, %c0_23] : memref<8x16x288xbf16, #tpu.memory_space<vmem>>, vector<8x16x288xbf16>
    %26 = vector.shape_cast %25 : vector<8x16x288xbf16> to vector<128x288xbf16>
    %c0_24 = arith.constant 0 : index
    %c0_25 = arith.constant 0 : index
    %27 = vector.load %arg3[%c0_24, %c0_25] : memref<288x32xbf16, #tpu.memory_space<vmem>>, vector<288x32xbf16>
    %cst = arith.constant dense<0.000000e+00> : vector<128x32xf32>
    %28 = tpu.matmul %26, %27, %cst {dimension_numbers = #tpu.dot_dimension_numbers<[1], [0], [0], [1], [0, 0, 1, 1], [], []>} : vector<128x288xbf16>, vector<288x32xbf16>, vector<128x32xf32> -> vector<128x32xf32>
    %c0_26 = arith.constant 0 : index
    %c0_27 = arith.constant 0 : index
    %29 = vector.load %arg4[%c0_26, %c0_27] : memref<1x32xf32, #tpu.memory_space<vmem>>, vector<1x32xf32>
    %30 = vector.broadcast %29 : vector<1x32xf32> to vector<128x32xf32>
    %31 = arith.addf %28, %30 : vector<128x32xf32>
    %cst_28 = arith.constant 0.000000e+00 : f32
    %32 = vector.broadcast %cst_28 : f32 to vector<128x32xf32>
    %33 = arith.maximumf %31, %32 : vector<128x32xf32>
    %34 = vector.shape_cast %33 : vector<128x32xf32> to vector<1x8x16x32xf32>
    %c0_29 = arith.constant 0 : index
    %c0_30 = arith.constant 0 : index
    %c0_31 = arith.constant 0 : index
    %c0_32 = arith.constant 0 : index
    %35 = vector.load %arg5[%c0_29, %c0_30, %c0_31, %c0_32] : memref<1x8x16x32xf32, #tpu.memory_space<vmem>>, vector<1x8x16x32xf32>
    tpu.vector_store %arg5[%c0_29, %c0_30, %c0_31, %c0_32], %34 {strides = array<i32>} : memref<1x8x16x32xf32, #tpu.memory_space<vmem>>, vector<1x8x16x32xf32>,
    return
  }
  func.func @transform_0(%arg0: i32, %arg1: i32) -> (i32, i32, i32, i32) {
    %c0_i32 = arith.constant 0 : i32
    %c0_i32_0 = arith.constant 0 : i32
    %c0_i32_1 = arith.constant 0 : i32
    %c0_i32_2 = arith.constant 0 : i32
    return %arg0, %c0_i32, %c0_i32_0, %c0_i32_1 : i32, i32, i32, i32
  }
  func.func @transform_1(%arg0: i32, %arg1: i32) -> (i32, i32) {
    %c0_i32 = arith.constant 0 : i32
    %c0_i32_0 = arith.constant 0 : i32
    %c0_i32_1 = arith.constant 0 : i32
    return %c0_i32, %c0_i32_0 : i32, i32
  }
  func.func @transform_2(%arg0: i32, %arg1: i32) -> (i32, i32) {
    %c0_i32 = arith.constant 0 : i32
    %c0_i32_0 = arith.constant 0 : i32
    %c0_i32_1 = arith.constant 0 : i32
    return %c0_i32, %c0_i32_0 : i32, i32
  }
  func.func @transform_3(%arg0: i32, %arg1: i32) -> (i32, i32, i32, i32) {
    %c0_i32 = arith.constant 0 : i32
    %c0_i32_0 = arith.constant 0 : i32
    %c0_i32_1 = arith.constant 0 : i32
    return %arg0, %arg1, %c0_i32, %c0_i32_0 : i32, i32, i32, i32
  }
}

</mosaic_0001>

<llo_original>
// kernel: tpu_custom_call.1
$region0: #{tpu_custom_call.1}
  #allocation0 [shape = 'u32[]', space=smem, size = 0x4, offset = 0x4, fixed_abs, tag = 'smem constant byte address 0x4 - core index']
  #allocation1 [shape = 'u32[144,128]{1,0:T(1,128)}', space=vmem, size = 0x12000, scoped, tag = 'internal scratch']
  #allocation2 [shape = 'bf16[18,18,32]{2,1,0:T(8,128)(2,1)}', space=vmem, size = 0x1b000, scoped, tag = 'scratch operand']
  #allocation3 [shape = 'bf16[8,16,288]{2,1,0:T(16,128)(2,1)}', space=vmem, size = 0x18000, scoped, tag = 'scratch operand']
  %s0 = inlined_call_operand.hbm [shape: f32[2,16,16,32], index: 0, kind: input, shape index: {}]
  %s1 = inlined_call_operand.vmem [shape: bf16[288,32], index: 1, kind: input, shape index: {}]
  %s2 = inlined_call_operand.vmem [shape: f32[1,32], index: 2, kind: input, shape index: {}]
  %s3 = inlined_call_operand.hbm [shape: f32[2,16,16,32], index: 3, kind: output, shape index: {}]
  %s4 = sld [smem:[#allocation0]]
  $region53: #{tpu_custom_call.1} parent=0
    _
  %s6 = ssub.s32 1, %s4
  %s7 = scalar_select 0, %s6, %s4
  $region1: #{tpu_custom_call.1} parent=0
    #allocation4 [shape = 'u8[262144]{0}', space=vmem, size = 0x40000, scoped, tag = 'input window, operand 0']
    #allocation5 [shape = 's32[2]{0}', space=sflag, size = 0x8, scoped, tag = 'scoped memory for tpu_custom_call.1']
    #allocation6 [shape = 's32[2]{0}', space=sflag, size = 0x8, scoped, tag = 'scoped memory for tpu_custom_call.1']
    #allocation7 [shape = 'u8[131072]{0}', space=vmem, size = 0x20000, scoped, tag = 'output window, operand 0']
    %8 = vsyncpa [#allocation5], 0
    %s9 = scalar_lea.sflag [#allocation5], 1
    %10 = vsyncpa %s9, 0
    %11 = vsyncpa [#allocation6], 0
    %s12 = scalar_lea.sflag [#allocation6], 1
    %13 = vsyncpa %s12, 0
    loop: start=0, step=1, limit=6
    $region2: #{tpu_custom_call.1} parent=1 // loop_pre_header
      _
    $region3: #{tpu_custom_call.1} parent=1 // loop_header
      %s15 = sphi 0, %s19
      %p16 = scmp.ge.s32.totalorder %s15, 6
      %s22 = sphi 0, %s34
      %s23 = sphi 0, %s30
      %s24 = sphi 0, %s22
      %s25 = sphi 0, %s23
      %s26 = sphi 0, %s24
      %s27 = sphi 0, %s25
      %s37 = sphi 0, %s39
      %s40 = sphi 0, %s37
      %s41 = sphi 0, %s40
      %s57 = sphi 0, %s41
      %s61 = sphi 0, %s61
      %s63 = sphi 0, %s61
      %s64 = sphi 0, %s63
      %s78 = sphi 0, %s64
      %s82 = sphi 0, %s82
      %s84 = sphi 0, %s82
      %s85 = sphi 0, %s84
      %s99 = sphi 0, %s85
      %s107 = sphi 0, %s109
      %s110 = sphi 0, %s107
      %s111 = sphi 0, %s110
      %s127 = sphi 0, %s111
    $region4: #{tpu_custom_call.1} parent=1 // loop_header_branch
      %18 = sbr.rel (%p16) target = $region8
    $region5: #{tpu_custom_call.1} parent=1 // loop_body
      %s20 = ssub.s32 %s15, 1
      %s21 = ssub.s32 %s15, 2
      %s28 = sadd.s32 1, %s23
      %p29 = scmp.ge.s32.totalorder %s28, 2
      %s30 = scalar_select %p29, 0, %s28
      %s31 = sadd.s32 1, %s22
      %s32 = scalar_select %p29, %s31, %s22
      %p33 = scmp.ge.s32.totalorder %s32, 2
      %s34 = scalar_select %p33, 0, %s32
      %s35 = ssub.s32 %s22, %s34
      %p36 = scmp.eq.s32.totalorder %s35, 0
      %s38 = sadd.s32 %s37, 1
      %s39 = scalar_select %p36, %s37, %s38
      %p42 = pneg %p36
      %p43 = scmp.eq.s32.totalorder %s15, 3
      %p44 = por %p42, %p43
      %p45 = scmp.ne.s32.totalorder %s37, %s40
      %p46 = scmp.eq.s32.totalorder %s15, 0
      %p47 = por %p45, %p46
      %p48 = scmp.ne.s32.totalorder %s37, %s40
      %p49 = scmp.eq.s32.totalorder %s20, 3
      %p50 = por %p48, %p49
      %p51 = scmp.ne.s32.totalorder %s40, %s41
      %p52 = scmp.eq.s32.totalorder %s20, 0
      %p53 = por %p51, %p52
      %p54 = scmp.ne.s32.totalorder %s40, %s41
      %p55 = scmp.eq.s32.totalorder %s21, 3
      %p56 = por %p54, %p55
      %p58 = scmp.ne.s32.totalorder %s41, %s57
      %p59 = scmp.eq.s32.totalorder %s21, 0
      %p60 = por %p58, %p59
      %s62 = sadd.s32 %s61, 1
      %p65 = scmp.eq.s32.totalorder %s15, 3
      %p66 = scmp.ne.s32.totalorder %s61, %s63
      %p67 = scmp.eq.s32.totalorder %s15, 0
      %p68 = por %p66, %p67
      %p69 = scmp.ne.s32.totalorder %s61, %s63
      %p70 = scmp.eq.s32.totalorder %s20, 3
      %p71 = por %p69, %p70
      %p72 = scmp.ne.s32.totalorder %s63, %s64
      %p73 = scmp.eq.s32.totalorder %s20, 0
      %p74 = por %p72, %p73
      %p75 = scmp.ne.s32.totalorder %s63, %s64
      %p76 = scmp.eq.s32.totalorder %s21, 3
      %p77 = por %p75, %p76
      %p79 = scmp.ne.s32.totalorder %s64, %s78
      %p80 = scmp.eq.s32.totalorder %s21, 0
      %p81 = por %p79, %p80
      %s83 = sadd.s32 %s82, 1
      %p86 = scmp.eq.s32.totalorder %s15, 3
      %p87 = scmp.ne.s32.totalorder %s82, %s84
      %p88 = scmp.eq.s32.totalorder %s15, 0
      %p89 = por %p87, %p88
      %p90 = scmp.ne.s32.totalorder %s82, %s84
      %p91 = scmp.eq.s32.totalorder %s20, 3
      %p92 = por %p90, %p91
      %p93 = scmp.ne.s32.totalorder %s84, %s85
      %p94 = scmp.eq.s32.totalorder %s20, 0
      %p95 = por %p93, %p94
      %p96 = scmp.ne.s32.totalorder %s84, %s85
      %p97 = scmp.eq.s32.totalorder %s21, 3
      %p98 = por %p96, %p97
      %p100 = scmp.ne.s32.totalorder %s85, %s99
      %p101 = scmp.eq.s32.totalorder %s21, 0
      %p102 = por %p100, %p101
      %s103 = ssub.s32 %s22, %s34
      %s104 = ssub.s32 %s23, %s30
      %s105 = sor.u32 %s103, %s104
      %p106 = scmp.eq.s32.totalorder %s105, 0
      %s108 = sadd.s32 %s107, 1
      %s109 = scalar_select %p106, %s107, %s108
      %p112 = pneg %p106
      %p113 = scmp.eq.s32.totalorder %s15, 3
      %p114 = por %p112, %p113
      %p115 = scmp.ne.s32.totalorder %s107, %s110
      %p116 = scmp.eq.s32.totalorder %s15, 0
      %p117 = por %p115, %p116
      %p118 = scmp.ne.s32.totalorder %s107, %s110
      %p119 = scmp.eq.s32.totalorder %s20, 3
      %p120 = por %p118, %p119
      %p121 = scmp.ne.s32.totalorder %s110, %s111
      %p122 = scmp.eq.s32.totalorder %s20, 0
      %p123 = por %p121, %p122
      %p124 = scmp.ne.s32.totalorder %s110, %s111
      %p125 = scmp.eq.s32.totalorder %s21, 3
      %p126 = por %p124, %p125
      %p128 = scmp.ne.s32.totalorder %s111, %s127
      %p129 = scmp.eq.s32.totalorder %s21, 0
      %p130 = por %p128, %p129
      %p131 = scmp.le.s32.totalorder 1, %s15
      %p132 = scmp.lt.s32.totalorder %s15, 5
      %p133 = pnand %p131, %p132
      %p134 = pneg %p133
      // Predicated region
      $region9: #{tpu_custom_call.1} parent=5 // pred_check
        _
      $region10: #{tpu_custom_call.1} parent=5 // pred_check_branch
        %136 = sbr.rel (%p133) target = $region12
      $region11: #{tpu_custom_call.1} parent=5 // pred_region
        %s137 = ssub.s32 %s15, 1
        // Predicated region
        $region13: #{tpu_custom_call.1} parent=11 // pred_check
          %p138 = pneg %p74
        $region14: #{tpu_custom_call.1} parent=11 // pred_check_branch
          %140 = sbr.rel (%p138) target = $region16
        $region15: #{tpu_custom_call.1} parent=11 // pred_region
          _
        $region16: #{tpu_custom_call.1} parent=11 // pred_fallthru
          _
        // Predicated region
        $region17: #{tpu_custom_call.1} parent=11 // pred_check
          %p141 = pneg %p95
        $region18: #{tpu_custom_call.1} parent=11 // pred_check_branch
          %143 = sbr.rel (%p141) target = $region20
        $region19: #{tpu_custom_call.1} parent=11 // pred_region
          _
        $region20: #{tpu_custom_call.1} parent=11 // pred_fallthru
          _
      $region12: #{tpu_custom_call.1} parent=5 // pred_fallthru
        _
      %p144 = scmp.lt.s32.totalorder %s15, 4
      // Predicated region
      $region21: #{tpu_custom_call.1} parent=5 // pred_check
        %p145 = pneg %p144
      $region22: #{tpu_custom_call.1} parent=5 // pred_check_branch
        %147 = sbr.rel (%p145) target = $region24
      $region23: #{tpu_custom_call.1} parent=5 // pred_region
        // Predicated region
        $region25: #{tpu_custom_call.1} parent=23 // pred_check
          %p148 = pneg %p47
        $region26: #{tpu_custom_call.1} parent=23 // pred_check_branch
          %150 = sbr.rel (%p148) target = $region28
        $region27: #{tpu_custom_call.1} parent=23 // pred_region
          %s151 = sand.u32 %s37, 1
          %s152 = scalar_lea.sflag [#allocation5], %s151
          %s153 = sand.u32 %s37, 1
          %s154 = smul.addr %s153, 256
          %s155 = scalar_lea.vmem [#allocation4], %s154
          %s157 = ssub.s32 4096, 4096
          %158 = vsyncadd %s152, %s157
          %s159 = smul.addr %s22, 32
          %s160 = smul.addr %s159, 128
          %s161 = scalar_lea.hbm %s0, %s160
          %s162 = sshll.u32 %s155, 4
          %s163 = int_to_ptr.vmem [resolvable:$true] %s162
          %168 = dma.hbm_to_vmem [thread:$0]  %s161, 4096, %s163, %s152, 128, 128, 8
        $region28: #{tpu_custom_call.1} parent=23 // pred_fallthru
          _
      $region24: #{tpu_custom_call.1} parent=5 // pred_fallthru
        _
      %p169 = scmp.le.s32.totalorder 1, %s15
      %p170 = scmp.lt.s32.totalorder %s15, 5
      %p171 = pnand %p169, %p170
      %p172 = pneg %p171
      // Predicated region
      $region29: #{tpu_custom_call.1} parent=5 // pred_check
        _
      $region30: #{tpu_custom_call.1} parent=5 // pred_check_branch
        %174 = sbr.rel (%p171) target = $region32
      $region31: #{tpu_custom_call.1} parent=5 // pred_region
        %s175 = ssub.s32 %s15, 1
        %s176 = sand.u32 %s40, 1
        %s177 = scalar_lea.sflag [#allocation5], %s176
        %s178 = sand.u32 %s40, 1
        %s179 = smul.addr %s178, 256
        %s180 = scalar_lea.vmem [#allocation4], %s179
        // Predicated region
        $region33: #{tpu_custom_call.1} parent=31 // pred_check
          %p181 = pneg %p53
        $region34: #{tpu_custom_call.1} parent=31 // pred_check_branch
          %183 = sbr.rel (%p181) target = $region36
        $region35: #{tpu_custom_call.1} parent=31 // pred_region
          %184 = dma.done %s177, 4096
        $region36: #{tpu_custom_call.1} parent=31 // pred_fallthru
          _
        %s185 = sand.u32 %s40, 1
        %s186 = scalar_lea.sflag [#allocation5], %s185
        %s187 = sand.u32 %s40, 1
        %s188 = smul.addr %s187, 256
        %s189 = scalar_lea.vmem [#allocation4], %s188
        %p190 = pneg %p53
        %p191 = pneg %p50
        %p192 = pneg %p74
        %p193 = pneg %p71
        %p194 = pneg %p95
        %p195 = pneg %p92
        %p196 = pneg %p123
        %p197 = pneg %p120
        %s198 = sand.u32 %s110, 1
        %s199 = scalar_lea.sflag [#allocation6], %s198
        %s200 = sand.u32 %s110, 1
        %s201 = smul.addr %s200, 128
        %s202 = scalar_lea.vmem [#allocation7], %s201
        %s203 = smul.u32 8, %s25
        %p205 = scmp.eq.s32.totalorder %s25, 0
        // Predicated region
        $region37: #{tpu_custom_call.1} parent=31 // pred_check
          %p206 = pneg %p205
        $region38: #{tpu_custom_call.1} parent=31 // pred_check_branch
          %208 = sbr.rel (%p206) target = $region40
        $region39: #{tpu_custom_call.1} parent=31 // pred_region
          %vm209 = vcmask 257024
          %210 = vst.msk [vmem:[#allocation2] sm:$0xf] %vm209, 0
          %211 = vst.msk [vmem:[#allocation2 + $0x4] sm:$0xf] %vm209, 0
          %vm212 = vcmask 253952
          %213 = vst.msk [vmem:[#allocation2 + $0x8] sm:$0x1] %vm212, 0
          %214 = vst.msk [vmem:[#allocation2 + $0xc] sm:$0xf] %vm209, 0
          %215 = vst.msk [vmem:[#allocation2 + $0x10] sm:$0xf] %vm209, 0
          %216 = vst.msk [vmem:[#allocation2 + $0x14] sm:$0x1] %vm212, 0
          %217 = vst.msk [vmem:[#allocation2 + $0x18] sm:$0xf] %vm209, 0
          %218 = vst.msk [vmem:[#allocation2 + $0x1c] sm:$0xf] %vm209, 0
          %219 = vst.msk [vmem:[#allocation2 + $0x20] sm:$0x1] %vm212, 0
          %220 = vst.msk [vmem:[#allocation2 + $0x24] sm:$0xf] %vm209, 0
          %221 = vst.msk [vmem:[#allocation2 + $0x28] sm:$0xf] %vm209, 0
          %222 = vst.msk [vmem:[#allocation2 + $0x2c] sm:$0x1] %vm212, 0
          %223 = vst.msk [vmem:[#allocation2 + $0x30] sm:$0xf] %vm209, 0
          %224 = vst.msk [vmem:[#allocation2 + $0x34] sm:$0xf] %vm209, 0
          %225 = vst.msk [vmem:[#allocation2 + $0x38] sm:$0x1] %vm212, 0
          %226 = vst.msk [vmem:[#allocation2 + $0x3c] sm:$0xf] %vm209, 0
          %227 = vst.msk [vmem:[#allocation2 + $0x40] sm:$0xf] %vm209, 0
          %228 = vst.msk [vmem:[#allocation2 + $0x44] sm:$0x1] %vm212, 0
          %229 = vst.msk [vmem:[#allocation2 + $0x48] sm:$0xf] %vm209, 0
          %230 = vst.msk [vmem:[#allocation2 + $0x4c] sm:$0xf] %vm209, 0
          %231 = vst.msk [vmem:[#allocation2 + $0x50] sm:$0x1] %vm212, 0
          %232 = vst.msk [vmem:[#allocation2 + $0x54] sm:$0xf] %vm209, 0
          %233 = vst.msk [vmem:[#allocation2 + $0x58] sm:$0xf] %vm209, 0
          %234 = vst.msk [vmem:[#allocation2 + $0x5c] sm:$0x1] %vm212, 0
          %235 = vst.msk [vmem:[#allocation2 + $0x60] sm:$0xf] %vm209, 0
          %236 = vst.msk [vmem:[#allocation2 + $0x64] sm:$0xf] %vm209, 0
          %237 = vst.msk [vmem:[#allocation2 + $0x68] sm:$0x1] %vm212, 0
          %238 = vst.msk [vmem:[#allocation2 + $0x6c] sm:$0xf] %vm209, 0
          %239 = vst.msk [vmem:[#allocation2 + $0x70] sm:$0xf] %vm209, 0
          %240 = vst.msk [vmem:[#allocation2 + $0x74] sm:$0x1] %vm212, 0
          %241 = vst.msk [vmem:[#allocation2 + $0x78] sm:$0xf] %vm209, 0
          %242 = vst.msk [vmem:[#allocation2 + $0x7c] sm:$0xf] %vm209, 0
          %243 = vst.msk [vmem:[#allocation2 + $0x80] sm:$0x1] %vm212, 0
          %244 = vst.msk [vmem:[#allocation2 + $0x84] sm:$0xf] %vm209, 0
          %245 = vst.msk [vmem:[#allocation2 + $0x88] sm:$0xf] %vm209, 0
          %246 = vst.msk [vmem:[#allocation2 + $0x8c] sm:$0x1] %vm212, 0
          %247 = vst.msk [vmem:[#allocation2 + $0x90] sm:$0xf] %vm209, 0
          %248 = vst.msk [vmem:[#allocation2 + $0x94] sm:$0xf] %vm209, 0
          %249 = vst.msk [vmem:[#allocation2 + $0x98] sm:$0x1] %vm212, 0
          %250 = vst.msk [vmem:[#allocation2 + $0x9c] sm:$0xf] %vm209, 0
          %251 = vst.msk [vmem:[#allocation2 + $0xa0] sm:$0xf] %vm209, 0
          %252 = vst.msk [vmem:[#allocation2 + $0xa4] sm:$0x1] %vm212, 0
          %253 = vst.msk [vmem:[#allocation2 + $0xa8] sm:$0xf] %vm209, 0
          %254 = vst.msk [vmem:[#allocation2 + $0xac] sm:$0xf] %vm209, 0
          %255 = vst.msk [vmem:[#allocation2 + $0xb0] sm:$0x1] %vm212, 0
          %256 = vst.msk [vmem:[#allocation2 + $0xb4] sm:$0xf] %vm209, 0
          %257 = vst.msk [vmem:[#allocation2 + $0xb8] sm:$0xf] %vm209, 0
          %258 = vst.msk [vmem:[#allocation2 + $0xbc] sm:$0x1] %vm212, 0
          %259 = vst.msk [vmem:[#allocation2 + $0xc0] sm:$0xf] %vm209, 0
          %260 = vst.msk [vmem:[#allocation2 + $0xc4] sm:$0xf] %vm209, 0
          %261 = vst.msk [vmem:[#allocation2 + $0xc8] sm:$0x1] %vm212, 0
          %262 = vst.msk [vmem:[#allocation2 + $0xcc] sm:$0xf] %vm209, 0
          %263 = vst.msk [vmem:[#allocation2 + $0xd0] sm:$0xf] %vm209, 0
          %264 = vst.msk [vmem:[#allocation2 + $0xd4] sm:$0x1] %vm212, 0
          %v265 = vld [vmem:[%s180] sm:$0xff]
          %v266 = vld [vmem:[%s180 + $0x8] sm:$0xff]
          %v267 = vld [vmem:[%s180 + $0x10] sm:$0xff]
          %v268 = vld [vmem:[%s180 + $0x18] sm:$0xff]
          %v269 = vld [vmem:[%s180 + $0x20] sm:$0xff]
          %v270 = vld [vmem:[%s180 + $0x28] sm:$0xff]
          %v271 = vld [vmem:[%s180 + $0x30] sm:$0xff]
          %v272 = vld [vmem:[%s180 + $0x38] sm:$0xff]
          %v273 = vld [vmem:[%s180 + $0x40] sm:$0xff]
          %v274 = vld [vmem:[%s180 + $0x48] sm:$0xff]
          %v275 = vld [vmem:[%s180 + $0x50] sm:$0xff]
          %v276 = vld [vmem:[%s180 + $0x58] sm:$0xff]
          %v277 = vld [vmem:[%s180 + $0x60] sm:$0xff]
          %v278 = vld [vmem:[%s180 + $0x68] sm:$0xff]
          %v279 = vld [vmem:[%s180 + $0x70] sm:$0xff]
          %v280 = vld [vmem:[%s180 + $0x78] sm:$0xff]
          %v281 = vld [vmem:[%s180 + $0x80] sm:$0xff]
          %v282 = vld [vmem:[%s180 + $0x88] sm:$0xff]
          %v283 = vld [vmem:[%s180 + $0x90] sm:$0xff]
          %v284 = vld [vmem:[%s180 + $0x98] sm:$0xff]
          %v285 = vld [vmem:[%s180 + $0xa0] sm:$0xff]
          %v286 = vld [vmem:[%s180 + $0xa8] sm:$0xff]
          %v287 = vld [vmem:[%s180 + $0xb0] sm:$0xff]
          %v288 = vld [vmem:[%s180 + $0xb8] sm:$0xff]
          %v289 = vld [vmem:[%s180 + $0xc0] sm:$0xff]
          %v290 = vld [vmem:[%s180 + $0xc8] sm:$0xff]
          %v291 = vld [vmem:[%s180 + $0xd0] sm:$0xff]
          %v292 = vld [vmem:[%s180 + $0xd8] sm:$0xff]
          %v293 = vld [vmem:[%s180 + $0xe0] sm:$0xff]
          %v294 = vld [vmem:[%s180 + $0xe8] sm:$0xff]
          %v295 = vld [vmem:[%s180 + $0xf0] sm:$0xff]
          %v296 = vld [vmem:[%s180 + $0xf8] sm:$0xff]
          %v297 = vpack.c.bf16 %v266, %v265
          %v298 = vpack.c.bf16 %v268, %v267
          %v299 = vpack.c.bf16 %v270, %v269
          %v300 = vpack.c.bf16 %v272, %v271
          %v301 = vpack.c.bf16 %v274, %v273
          %v302 = vpack.c.bf16 %v276, %v275
          %v303 = vpack.c.bf16 %v278, %v277
          %v304 = vpack.c.bf16 %v280, %v279
          %v305 = vpack.c.bf16 %v282, %v281
          %v306 = vpack.c.bf16 %v284, %v283
          %v307 = vpack.c.bf16 %v286, %v285
          %v308 = vpack.c.bf16 %v288, %v287
          %v309 = vpack.c.bf16 %v290, %v289
          %v310 = vpack.c.bf16 %v292, %v291
          %v311 = vpack.c.bf16 %v294, %v293
          %v312 = vpack.c.bf16 %v296, %v295
          %v329 = vunpack.c.l.b16 %v297
          %v330 = vunpack.c.h.b16 %v297
          %v331 = vunpack.c.l.b16 %v298
          %v332 = vunpack.c.h.b16 %v298
          %v333 = vunpack.c.l.b16 %v299
          %v334 = vunpack.c.h.b16 %v299
          %v335 = vunpack.c.l.b16 %v300
          %v336 = vunpack.c.h.b16 %v300
          %v337 = vunpack.c.l.b16 %v301
          %v338 = vunpack.c.h.b16 %v301
          %v339 = vunpack.c.l.b16 %v302
          %v340 = vunpack.c.h.b16 %v302
          %v341 = vunpack.c.l.b16 %v303
          %v342 = vunpack.c.h.b16 %v303
          %v343 = vunpack.c.l.b16 %v304
          %v344 = vunpack.c.h.b16 %v304
          %v345 = vunpack.c.l.b16 %v305
          %v346 = vunpack.c.h.b16 %v305
          %v347 = vunpack.c.l.b16 %v306
          %v348 = vunpack.c.h.b16 %v306
          %v349 = vunpack.c.l.b16 %v307
          %v350 = vunpack.c.h.b16 %v307
          %v351 = vunpack.c.l.b16 %v308
          %v352 = vunpack.c.h.b16 %v308
          %v353 = vunpack.c.l.b16 %v309
          %v354 = vunpack.c.h.b16 %v309
          %v355 = vunpack.c.l.b16 %v310
          %v356 = vunpack.c.h.b16 %v310
          %v357 = vunpack.c.l.b16 %v311
          %v358 = vunpack.c.h.b16 %v311
          %v359 = vunpack.c.l.b16 %v312
          %v360 = vunpack.c.h.b16 %v312
          %v361 = vpack.c.b16 %v329, %v329
          %v362 = vpack.c.b16 %v330, %v330
          %v363 = vpack.c.b16 %v331, %v331
          %v364 = vpack.c.b16 %v332, %v332
          %v365 = vpack.c.b16 %v333, %v333
          %v366 = vpack.c.b16 %v334, %v334
          %v367 = vpack.c.b16 %v335, %v335
          %v368 = vpack.c.b16 %v336, %v336
          %v369 = vpack.c.b16 %v337, %v337
          %v370 = vpack.c.b16 %v338, %v338
          %v371 = vpack.c.b16 %v339, %v339
          %v372 = vpack.c.b16 %v340, %v340
          %v373 = vpack.c.b16 %v341, %v341
          %v374 = vpack.c.b16 %v342, %v342
          %v375 = vpack.c.b16 %v343, %v343
          %v376 = vpack.c.b16 %v344, %v344
          %v377 = vpack.c.b16 %v345, %v345
          %v378 = vpack.c.b16 %v346, %v346
          %v379 = vpack.c.b16 %v347, %v347
          %v380 = vpack.c.b16 %v348, %v348
          %v381 = vpack.c.b16 %v349, %v349
          %v382 = vpack.c.b16 %v350, %v350
          %v383 = vpack.c.b16 %v351, %v351
          %v384 = vpack.c.b16 %v352, %v352
          %v385 = vpack.c.b16 %v353, %v353
          %v386 = vpack.c.b16 %v354, %v354
          %v387 = vpack.c.b16 %v355, %v355
          %v388 = vpack.c.b16 %v356, %v356
          %v389 = vpack.c.b16 %v357, %v357
          %v390 = vpack.c.b16 %v358, %v358
          %v391 = vpack.c.b16 %v359, %v359
          %v392 = vpack.c.b16 %v360, %v360
          %vm393 = vsmask.f32 256
          %vm394 = vsmask.f32 4368
          %vm395 = vmor %vm393, %vm394
          %v397 = vshrl.u32 %v361, 16
          %v399 = vrot.slane %v397, 7
          %v400 = vshll.u32 %v361, 16
          %v402 = vor.u32 %v399, %v400
          %v403 = vrot.slane %v399, 4
          %v405 = vshrl.u32 %v362, 16
          %v407 = vrot.slane %v405, 7
          %v408 = vshll.u32 %v362, 16
          %v410 = vor.u32 %v407, %v408
          %v411 = vsel %vm395, %v403, %v410
          %v412 = vrot.slane %v407, 4
          %v414 = vshrl.u32 %v363, 16
          %v416 = vrot.slane %v414, 7
          %v417 = vshll.u32 %v363, 16
          %v419 = vor.u32 %v416, %v417
          %v420 = vrot.slane %v416, 4
          %v422 = vshrl.u32 %v364, 16
          %v424 = vrot.slane %v422, 7
          %v425 = vshll.u32 %v364, 16
          %v427 = vor.u32 %v424, %v425
          %v428 = vsel %vm395, %v420, %v427
          %v429 = vrot.slane %v424, 4
          %v431 = vshrl.u32 %v365, 16
          %v433 = vrot.slane %v431, 7
          %v434 = vshll.u32 %v365, 16
          %v436 = vor.u32 %v433, %v434
          %v437 = vrot.slane %v433, 4
          %v439 = vshrl.u32 %v366, 16
          %v441 = vrot.slane %v439, 7
          %v442 = vshll.u32 %v366, 16
          %v444 = vor.u32 %v441, %v442
          %v445 = vsel %vm395, %v437, %v444
          %v446 = vrot.slane %v441, 4
          %v448 = vshrl.u32 %v367, 16
          %v450 = vrot.slane %v448, 7
          %v451 = vshll.u32 %v367, 16
          %v453 = vor.u32 %v450, %v451
          %v454 = vrot.slane %v450, 4
          %v456 = vshrl.u32 %v368, 16
          %v458 = vrot.slane %v456, 7
          %v459 = vshll.u32 %v368, 16
          %v461 = vor.u32 %v458, %v459
          %v462 = vsel %vm395, %v454, %v461
          %v463 = vrot.slane %v458, 4
          %v465 = vshrl.u32 %v369, 16
          %v467 = vrot.slane %v465, 7
          %v468 = vshll.u32 %v369, 16
          %v470 = vor.u32 %v467, %v468
          %v471 = vrot.slane %v467, 4
          %v473 = vshrl.u32 %v370, 16
          %v475 = vrot.slane %v473, 7
          %v476 = vshll.u32 %v370, 16
          %v478 = vor.u32 %v475, %v476
          %v479 = vsel %vm395, %v471, %v478
          %v480 = vrot.slane %v475, 4
          %v482 = vshrl.u32 %v371, 16
          %v484 = vrot.slane %v482, 7
          %v485 = vshll.u32 %v371, 16
          %v487 = vor.u32 %v484, %v485
          %v488 = vrot.slane %v484, 4
          %v490 = vshrl.u32 %v372, 16
          %v492 = vrot.slane %v490, 7
          %v493 = vshll.u32 %v372, 16
          %v495 = vor.u32 %v492, %v493
          %v496 = vsel %vm395, %v488, %v495
          %v497 = vrot.slane %v492, 4
          %v499 = vshrl.u32 %v373, 16
          %v501 = vrot.slane %v499, 7
          %v502 = vshll.u32 %v373, 16
          %v504 = vor.u32 %v501, %v502
          %v505 = vrot.slane %v501, 4
          %v507 = vshrl.u32 %v374, 16
          %v509 = vrot.slane %v507, 7
          %v510 = vshll.u32 %v374, 16
          %v512 = vor.u32 %v509, %v510
          %v513 = vsel %vm395, %v505, %v512
          %v514 = vrot.slane %v509, 4
          %v516 = vshrl.u32 %v375, 16
          %v518 = vrot.slane %v516, 7
          %v519 = vshll.u32 %v375, 16
          %v521 = vor.u32 %v518, %v519
          %v522 = vrot.slane %v518, 4
          %v524 = vshrl.u32 %v376, 16
          %v526 = vrot.slane %v524, 7
          %v527 = vshll.u32 %v376, 16
          %v529 = vor.u32 %v526, %v527
          %v530 = vsel %vm395, %v522, %v529
          %v531 = vrot.slane %v526, 4
          %v533 = vshrl.u32 %v377, 16
          %v535 = vrot.slane %v533, 7
          %v536 = vshll.u32 %v377, 16
          %v538 = vor.u32 %v535, %v536
          %v539 = vrot.slane %v535, 4
          %v541 = vshrl.u32 %v378, 16
          %v543 = vrot.slane %v541, 7
          %v544 = vshll.u32 %v378, 16
          %v546 = vor.u32 %v543, %v544
          %v547 = vsel %vm395, %v539, %v546
          %v548 = vrot.slane %v543, 4
          %v550 = vshrl.u32 %v379, 16
          %v552 = vrot.slane %v550, 7
          %v553 = vshll.u32 %v379, 16
          %v555 = vor.u32 %v552, %v553
          %v556 = vrot.slane %v552, 4
          %v558 = vshrl.u32 %v380, 16
          %v560 = vrot.slane %v558, 7
          %v561 = vshll.u32 %v380, 16
          %v563 = vor.u32 %v560, %v561
          %v564 = vsel %vm395, %v556, %v563
          %v565 = vrot.slane %v560, 4
          %v567 = vshrl.u32 %v381, 16
          %v569 = vrot.slane %v567, 7
          %v570 = vshll.u32 %v381, 16
          %v572 = vor.u32 %v569, %v570
          %v573 = vrot.slane %v569, 4
          %v575 = vshrl.u32 %v382, 16
          %v577 = vrot.slane %v575, 7
          %v578 = vshll.u32 %v382, 16
          %v580 = vor.u32 %v577, %v578
          %v581 = vsel %vm395, %v573, %v580
          %v582 = vrot.slane %v577, 4
          %v584 = vshrl.u32 %v383, 16
          %v586 = vrot.slane %v584, 7
          %v587 = vshll.u32 %v383, 16
          %v589 = vor.u32 %v586, %v587
          %v590 = vrot.slane %v586, 4
          %v592 = vshrl.u32 %v384, 16
          %v594 = vrot.slane %v592, 7
          %v595 = vshll.u32 %v384, 16
          %v597 = vor.u32 %v594, %v595
          %v598 = vsel %vm395, %v590, %v597
          %v599 = vrot.slane %v594, 4
          %v601 = vshrl.u32 %v385, 16
          %v603 = vrot.slane %v601, 7
          %v604 = vshll.u32 %v385, 16
          %v606 = vor.u32 %v603, %v604
          %v607 = vrot.slane %v603, 4
          %v609 = vshrl.u32 %v386, 16
          %v611 = vrot.slane %v609, 7
          %v612 = vshll.u32 %v386, 16
          %v614 = vor.u32 %v611, %v612
          %v615 = vsel %vm395, %v607, %v614
          %v616 = vrot.slane %v611, 4
          %v618 = vshrl.u32 %v387, 16
          %v620 = vrot.slane %v618, 7
          %v621 = vshll.u32 %v387, 16
          %v623 = vor.u32 %v620, %v621
          %v624 = vrot.slane %v620, 4
          %v626 = vshrl.u32 %v388, 16
          %v628 = vrot.slane %v626, 7
          %v629 = vshll.u32 %v388, 16
          %v631 = vor.u32 %v628, %v629
          %v632 = vsel %vm395, %v624, %v631
          %v633 = vrot.slane %v628, 4
          %v635 = vshrl.u32 %v389, 16
          %v637 = vrot.slane %v635, 7
          %v638 = vshll.u32 %v389, 16
          %v640 = vor.u32 %v637, %v638
          %v641 = vrot.slane %v637, 4
          %v643 = vshrl.u32 %v390, 16
          %v645 = vrot.slane %v643, 7
          %v646 = vshll.u32 %v390, 16
          %v648 = vor.u32 %v645, %v646
          %v649 = vsel %vm395, %v641, %v648
          %v650 = vrot.slane %v645, 4
          %v652 = vshrl.u32 %v391, 16
          %v654 = vrot.slane %v652, 7
          %v655 = vshll.u32 %v391, 16
          %v657 = vor.u32 %v654, %v655
          %v658 = vrot.slane %v654, 4
          %v660 = vshrl.u32 %v392, 16
          %v662 = vrot.slane %v660, 7
          %v663 = vshll.u32 %v392, 16
          %v665 = vor.u32 %v662, %v663
          %v666 = vsel %vm395, %v658, %v665
          %v667 = vrot.slane %v662, 4
          %s716 = scalar_lea.vmem [#allocation2], 12
          %vm717 = vcmask 257024
          %vm718 = vsmask.f32 7938
          %vm719 = vmand %vm717, %vm718
          %v720 = vld [vmem:[%s716] sm:$0xf]
          %v721 = vsel %vm719, %v402, %v720
          %722 = vst [vmem:[%s716] sm:$0xf] %v721
          %723 = vst.msk [vmem:[%s716 + $0x4] sm:$0xf] %vm209, %v411
          %vm724 = vcmask 253952
          %vm725 = vmand %vm724, %vm393
          %v726 = vld [vmem:[%s716 + $0x8] sm:$0x1]
          %v727 = vsel %vm725, %v412, %v726
          %728 = vst [vmem:[%s716 + $0x8] sm:$0x1] %v727
          %v729 = vld [vmem:[%s716 + $0xc] sm:$0xf]
          %v730 = vsel %vm719, %v419, %v729
          %731 = vst [vmem:[%s716 + $0xc] sm:$0xf] %v730
          %732 = vst.msk [vmem:[%s716 + $0x10] sm:$0xf] %vm209, %v428
          %v733 = vld [vmem:[%s716 + $0x14] sm:$0x1]
          %v734 = vsel %vm725, %v429, %v733
          %735 = vst [vmem:[%s716 + $0x14] sm:$0x1] %v734
          %v736 = vld [vmem:[%s716 + $0x18] sm:$0xf]
          %v737 = vsel %vm719, %v436, %v736
          %738 = vst [vmem:[%s716 + $0x18] sm:$0xf] %v737
          %739 = vst.msk [vmem:[%s716 + $0x1c] sm:$0xf] %vm209, %v445
          %v740 = vld [vmem:[%s716 + $0x20] sm:$0x1]
          %v741 = vsel %vm725, %v446, %v740
          %742 = vst [vmem:[%s716 + $0x20] sm:$0x1] %v741
          %v743 = vld [vmem:[%s716 + $0x24] sm:$0xf]
          %v744 = vsel %vm719, %v453, %v743
          %745 = vst [vmem:[%s716 + $0x24] sm:$0xf] %v744
          %746 = vst.msk [vmem:[%s716 + $0x28] sm:$0xf] %vm209, %v462
          %v747 = vld [vmem:[%s716 + $0x2c] sm:$0x1]
          %v748 = vsel %vm725, %v463, %v747
          %749 = vst [vmem:[%s716 + $0x2c] sm:$0x1] %v748
          %v750 = vld [vmem:[%s716 + $0x30] sm:$0xf]
          %v751 = vsel %vm719, %v470, %v750
          %752 = vst [vmem:[%s716 + $0x30] sm:$0xf] %v751
          %753 = vst.msk [vmem:[%s716 + $0x34] sm:$0xf] %vm209, %v479
          %v754 = vld [vmem:[%s716 + $0x38] sm:$0x1]
          %v755 = vsel %vm725, %v480, %v754
          %756 = vst [vmem:[%s716 + $0x38] sm:$0x1] %v755
          %v757 = vld [vmem:[%s716 + $0x3c] sm:$0xf]
          %v758 = vsel %vm719, %v487, %v757
          %759 = vst [vmem:[%s716 + $0x3c] sm:$0xf] %v758
          %760 = vst.msk [vmem:[%s716 + $0x40] sm:$0xf] %vm209, %v496
          %v761 = vld [vmem:[%s716 + $0x44] sm:$0x1]
          %v762 = vsel %vm725, %v497, %v761
          %763 = vst [vmem:[%s716 + $0x44] sm:$0x1] %v762
          %v764 = vld [vmem:[%s716 + $0x48] sm:$0xf]
          %v765 = vsel %vm719, %v504, %v764
          %766 = vst [vmem:[%s716 + $0x48] sm:$0xf] %v765
          %767 = vst.msk [vmem:[%s716 + $0x4c] sm:$0xf] %vm209, %v513
          %v768 = vld [vmem:[%s716 + $0x50] sm:$0x1]
          %v769 = vsel %vm725, %v514, %v768
          %770 = vst [vmem:[%s716 + $0x50] sm:$0x1] %v769
          %v771 = vld [vmem:[%s716 + $0x54] sm:$0xf]
          %v772 = vsel %vm719, %v521, %v771
          %773 = vst [vmem:[%s716 + $0x54] sm:$0xf] %v772
          %774 = vst.msk [vmem:[%s716 + $0x58] sm:$0xf] %vm209, %v530
          %v775 = vld [vmem:[%s716 + $0x5c] sm:$0x1]
          %v776 = vsel %vm725, %v531, %v775
          %777 = vst [vmem:[%s716 + $0x5c] sm:$0x1] %v776
          %v778 = vld [vmem:[%s716 + $0x60] sm:$0xf]
          %v779 = vsel %vm719, %v538, %v778
          %780 = vst [vmem:[%s716 + $0x60] sm:$0xf] %v779
          %781 = vst.msk [vmem:[%s716 + $0x64] sm:$0xf] %vm209, %v547
          %v782 = vld [vmem:[%s716 + $0x68] sm:$0x1]
          %v783 = vsel %vm725, %v548, %v782
          %784 = vst [vmem:[%s716 + $0x68] sm:$0x1] %v783
          %v785 = vld [vmem:[%s716 + $0x6c] sm:$0xf]
          %v786 = vsel %vm719, %v555, %v785
          %787 = vst [vmem:[%s716 + $0x6c] sm:$0xf] %v786
          %788 = vst.msk [vmem:[%s716 + $0x70] sm:$0xf] %vm209, %v564
          %v789 = vld [vmem:[%s716 + $0x74] sm:$0x1]
          %v790 = vsel %vm725, %v565, %v789
          %791 = vst [vmem:[%s716 + $0x74] sm:$0x1] %v790
          %v792 = vld [vmem:[%s716 + $0x78] sm:$0xf]
          %v793 = vsel %vm719, %v572, %v792
          %794 = vst [vmem:[%s716 + $0x78] sm:$0xf] %v793
          %795 = vst.msk [vmem:[%s716 + $0x7c] sm:$0xf] %vm209, %v581
          %v796 = vld [vmem:[%s716 + $0x80] sm:$0x1]
          %v797 = vsel %vm725, %v582, %v796
          %798 = vst [vmem:[%s716 + $0x80] sm:$0x1] %v797
          %v799 = vld [vmem:[%s716 + $0x84] sm:$0xf]
          %v800 = vsel %vm719, %v589, %v799
          %801 = vst [vmem:[%s716 + $0x84] sm:$0xf] %v800
          %802 = vst.msk [vmem:[%s716 + $0x88] sm:$0xf] %vm209, %v598
          %v803 = vld [vmem:[%s716 + $0x8c] sm:$0x1]
          %v804 = vsel %vm725, %v599, %v803
          %805 = vst [vmem:[%s716 + $0x8c] sm:$0x1] %v804
          %v806 = vld [vmem:[%s716 + $0x90] sm:$0xf]
          %v807 = vsel %vm719, %v606, %v806
          %808 = vst [vmem:[%s716 + $0x90] sm:$0xf] %v807
          %809 = vst.msk [vmem:[%s716 + $0x94] sm:$0xf] %vm209, %v615
          %v810 = vld [vmem:[%s716 + $0x98] sm:$0x1]
          %v811 = vsel %vm725, %v616, %v810
          %812 = vst [vmem:[%s716 + $0x98] sm:$0x1] %v811
          %v813 = vld [vmem:[%s716 + $0x9c] sm:$0xf]
          %v814 = vsel %vm719, %v623, %v813
          %815 = vst [vmem:[%s716 + $0x9c] sm:$0xf] %v814
          %816 = vst.msk [vmem:[%s716 + $0xa0] sm:$0xf] %vm209, %v632
          %v817 = vld [vmem:[%s716 + $0xa4] sm:$0x1]
          %v818 = vsel %vm725, %v633, %v817
          %819 = vst [vmem:[%s716 + $0xa4] sm:$0x1] %v818
          %v820 = vld [vmem:[%s716 + $0xa8] sm:$0xf]
          %v821 = vsel %vm719, %v640, %v820
          %822 = vst [vmem:[%s716 + $0xa8] sm:$0xf] %v821
          %823 = vst.msk [vmem:[%s716 + $0xac] sm:$0xf] %vm209, %v649
          %v824 = vld [vmem:[%s716 + $0xb0] sm:$0x1]
          %v825 = vsel %vm725, %v650, %v824
          %826 = vst [vmem:[%s716 + $0xb0] sm:$0x1] %v825
          %v827 = vld [vmem:[%s716 + $0xb4] sm:$0xf]
          %v828 = vsel %vm719, %v657, %v827
          %829 = vst [vmem:[%s716 + $0xb4] sm:$0xf] %v828
          %830 = vst.msk [vmem:[%s716 + $0xb8] sm:$0xf] %vm209, %v666
          %v831 = vld [vmem:[%s716 + $0xbc] sm:$0x1]
          %v832 = vsel %vm725, %v667, %v831
          %833 = vst [vmem:[%s716 + $0xbc] sm:$0x1] %v832
        $region40: #{tpu_custom_call.1} parent=31 // pred_fallthru
          _
        %s834 = smul.u32 %s25, 8
        %s835 = smul.u32 %s834, 3
        %s836 = smul.addr %s835, 4
        %s837 = scalar_lea.vmem [#allocation2], %s836
        %v838 = vld [vmem:[%s837] sm:$0xf]
        %v839 = vld [vmem:[%s837 + $0x4] sm:$0xf]
        %v840 = vld [vmem:[%s837 + $0x8] sm:$0x1]
        %v841 = vld [vmem:[%s837 + $0xc] sm:$0xf]
        %v842 = vld [vmem:[%s837 + $0x10] sm:$0xf]
        %v843 = vld [vmem:[%s837 + $0x14] sm:$0x1]
        %v844 = vld [vmem:[%s837 + $0x18] sm:$0xf]
        %v845 = vld [vmem:[%s837 + $0x1c] sm:$0xf]
        %v846 = vld [vmem:[%s837 + $0x20] sm:$0x1]
        %v847 = vld [vmem:[%s837 + $0x24] sm:$0xf]
        %v848 = vld [vmem:[%s837 + $0x28] sm:$0xf]
        %v849 = vld [vmem:[%s837 + $0x2c] sm:$0x1]
        %v850 = vld [vmem:[%s837 + $0x30] sm:$0xf]
        %v851 = vld [vmem:[%s837 + $0x34] sm:$0xf]
        %v852 = vld [vmem:[%s837 + $0x38] sm:$0x1]
        %v853 = vld [vmem:[%s837 + $0x3c] sm:$0xf]
        %v854 = vld [vmem:[%s837 + $0x40] sm:$0xf]
        %v855 = vld [vmem:[%s837 + $0x44] sm:$0x1]
        %v856 = vld [vmem:[%s837 + $0x48] sm:$0xf]
        %v857 = vld [vmem:[%s837 + $0x4c] sm:$0xf]
        %v858 = vld [vmem:[%s837 + $0x50] sm:$0x1]
        %v859 = vld [vmem:[%s837 + $0x54] sm:$0xf]
        %v860 = vld [vmem:[%s837 + $0x58] sm:$0xf]
        %v861 = vld [vmem:[%s837 + $0x5c] sm:$0x1]
        %v862 = vld [vmem:[%s837 + $0x60] sm:$0xf]
        %v863 = vld [vmem:[%s837 + $0x64] sm:$0xf]
        %v864 = vld [vmem:[%s837 + $0x68] sm:$0x1]
        %v865 = vld [vmem:[%s837 + $0x6c] sm:$0xf]
        %v866 = vld [vmem:[%s837 + $0x70] sm:$0xf]
        %v867 = vld [vmem:[%s837 + $0x74] sm:$0x1]
        %v884 = vunpack.c.l.b16 %v838
        %v885 = vunpack.c.l.b16 %v839
        %v886 = vunpack.c.l.b16 %v841
        %v887 = vunpack.c.l.b16 %v842
        %v888 = vunpack.c.l.b16 %v844
        %v889 = vunpack.c.l.b16 %v845
        %v890 = vunpack.c.l.b16 %v847
        %v891 = vunpack.c.l.b16 %v848
        %v892 = vunpack.c.l.b16 %v850
        %v893 = vunpack.c.l.b16 %v851
        %v894 = vunpack.c.l.b16 %v853
        %v895 = vunpack.c.l.b16 %v854
        %v896 = vunpack.c.l.b16 %v856
        %v897 = vunpack.c.l.b16 %v857
        %v898 = vunpack.c.l.b16 %v859
        %v899 = vunpack.c.l.b16 %v860
        %v900 = vpack.c.b16 %v885, %v884
        %v901 = vpack.c.b16 %v887, %v886
        %v902 = vpack.c.b16 %v889, %v888
        %v903 = vpack.c.b16 %v891, %v890
        %v904 = vpack.c.b16 %v893, %v892
        %v905 = vpack.c.b16 %v895, %v894
        %v906 = vpack.c.b16 %v897, %v896
        %v907 = vpack.c.b16 %v899, %v898
        %vm916 = vcmask 261120
        %917 = vst.msk [vmem:[#allocation3] sm:$0xff] %vm916, %v900
        %918 = vst.msk [vmem:[#allocation3 + $0x18] sm:$0xff] %vm916, %v901
        %919 = vst.msk [vmem:[#allocation3 + $0x30] sm:$0xff] %vm916, %v902
        %920 = vst.msk [vmem:[#allocation3 + $0x48] sm:$0xff] %vm916, %v903
        %921 = vst.msk [vmem:[#allocation3 + $0x60] sm:$0xff] %vm916, %v904
        %922 = vst.msk [vmem:[#allocation3 + $0x78] sm:$0xff] %vm916, %v905
        %923 = vst.msk [vmem:[#allocation3 + $0x90] sm:$0xff] %vm916, %v906
        %924 = vst.msk [vmem:[#allocation3 + $0xa8] sm:$0xff] %vm916, %v907
        %v933 = vunpack.c.l.b16 %v840
        %v934 = vunpack.c.l.b16 %v843
        %v935 = vunpack.c.l.b16 %v846
        %v936 = vunpack.c.l.b16 %v849
        %v937 = vunpack.c.l.b16 %v852
        %v938 = vunpack.c.l.b16 %v855
        %v939 = vunpack.c.l.b16 %v858
        %v940 = vunpack.c.l.b16 %v861
        %v941 = vpack.c.b16 %v933, %v933
        %v942 = vpack.c.b16 %v934, %v934
        %v943 = vpack.c.b16 %v935, %v935
        %v944 = vpack.c.b16 %v936, %v936
        %v945 = vpack.c.b16 %v937, %v937
        %v946 = vpack.c.b16 %v938, %v938
        %v947 = vpack.c.b16 %v939, %v939
        %v948 = vpack.c.b16 %v940, %v940
        %vm949 = vsmask.f32 7424
        %v951 = vshrl.u32 %v900, 16
        %v953 = vshll.u32 %v900, 16
        %v955 = vrot.slane %v953, 1
        %v956 = vor.u32 %v951, %v955
        %v958 = vshll.u32 %v941, 16
        %v960 = vrot.slane %v958, 1
        %v961 = vsel %vm949, %v956, %v960
        %v963 = vshrl.u32 %v901, 16
        %v965 = vshll.u32 %v901, 16
        %v967 = vrot.slane %v965, 1
        %v968 = vor.u32 %v963, %v967
        %v970 = vshll.u32 %v942, 16
        %v972 = vrot.slane %v970, 1
        %v973 = vsel %vm949, %v968, %v972
        %v975 = vshrl.u32 %v902, 16
        %v977 = vshll.u32 %v902, 16
        %v979 = vrot.slane %v977, 1
        %v980 = vor.u32 %v975, %v979
        %v982 = vshll.u32 %v943, 16
        %v984 = vrot.slane %v982, 1
        %v985 = vsel %vm949, %v980, %v984
        %v987 = vshrl.u32 %v903, 16
        %v989 = vshll.u32 %v903, 16
        %v991 = vrot.slane %v989, 1
        %v992 = vor.u32 %v987, %v991
        %v994 = vshll.u32 %v944, 16
        %v996 = vrot.slane %v994, 1
        %v997 = vsel %vm949, %v992, %v996
        %v999 = vshrl.u32 %v904, 16
        %v1001 = vshll.u32 %v904, 16
        %v1003 = vrot.slane %v1001, 1
        %v1004 = vor.u32 %v999, %v1003
        %v1006 = vshll.u32 %v945, 16
        %v1008 = vrot.slane %v1006, 1
        %v1009 = vsel %vm949, %v1004, %v1008
        %v1011 = vshrl.u32 %v905, 16
        %v1013 = vshll.u32 %v905, 16
        %v1015 = vrot.slane %v1013, 1
        %v1016 = vor.u32 %v1011, %v1015
        %v1018 = vshll.u32 %v946, 16
        %v1020 = vrot.slane %v1018, 1
        %v1021 = vsel %vm949, %v1016, %v1020
        %v1023 = vshrl.u32 %v906, 16
        %v1025 = vshll.u32 %v906, 16
        %v1027 = vrot.slane %v1025, 1
        %v1028 = vor.u32 %v1023, %v1027
        %v1030 = vshll.u32 %v947, 16
        %v1032 = vrot.slane %v1030, 1
        %v1033 = vsel %vm949, %v1028, %v1032
        %v1035 = vshrl.u32 %v907, 16
        %v1037 = vshll.u32 %v907, 16
        %v1039 = vrot.slane %v1037, 1
        %v1040 = vor.u32 %v1035, %v1039
        %v1042 = vshll.u32 %v948, 16
        %v1044 = vrot.slane %v1042, 1
        %v1045 = vsel %vm949, %v1040, %v1044
        %1046 = vrot.lane.b32.xlu0 %v961, 32
        %v1047 = vpop.permute.xlu0 %1046
        %1048 = vrot.lane.b32.xlu0 %v973, 32
        %v1049 = vpop.permute.xlu0 %1048
        %1050 = vrot.lane.b32.xlu0 %v985, 32
        %v1051 = vpop.permute.xlu0 %1050
        %1052 = vrot.lane.b32.xlu0 %v997, 32
        %v1053 = vpop.permute.xlu0 %1052
        %1054 = vrot.lane.b32.xlu0 %v1009, 32
        %v1055 = vpop.permute.xlu0 %1054
        %1056 = vrot.lane.b32.xlu0 %v1021, 32
        %v1057 = vpop.permute.xlu0 %1056
        %1058 = vrot.lane.b32.xlu0 %v1033, 32
        %v1059 = vpop.permute.xlu0 %1058
        %1060 = vrot.lane.b32.xlu0 %v1045, 32
        %v1061 = vpop.permute.xlu0 %1060
        %vm1070 = vcmask 523520
        %1071 = vst.msk [vmem:[#allocation3] sm:$0xff] %vm1070, %v1047
        %1072 = vst.msk [vmem:[#allocation3 + $0x18] sm:$0xff] %vm1070, %v1049
        %1073 = vst.msk [vmem:[#allocation3 + $0x30] sm:$0xff] %vm1070, %v1051
        %1074 = vst.msk [vmem:[#allocation3 + $0x48] sm:$0xff] %vm1070, %v1053
        %1075 = vst.msk [vmem:[#allocation3 + $0x60] sm:$0xff] %vm1070, %v1055
        %1076 = vst.msk [vmem:[#allocation3 + $0x78] sm:$0xff] %vm1070, %v1057
        %1077 = vst.msk [vmem:[#allocation3 + $0x90] sm:$0xff] %vm1070, %v1059
        %1078 = vst.msk [vmem:[#allocation3 + $0xa8] sm:$0xff] %vm1070, %v1061
        %vm1079 = vcmask 1046528
        %v1080 = vrot.slane %v900, 1
        %v1081 = vrot.slane %v941, 1
        %v1082 = vsel %vm1079, %v1080, %v1081
        %v1083 = vrot.slane %v901, 1
        %v1084 = vrot.slane %v942, 1
        %v1085 = vsel %vm1079, %v1083, %v1084
        %v1086 = vrot.slane %v902, 1
        %v1087 = vrot.slane %v943, 1
        %v1088 = vsel %vm1079, %v1086, %v1087
        %v1089 = vrot.slane %v903, 1
        %v1090 = vrot.slane %v944, 1
        %v1091 = vsel %vm1079, %v1089, %v1090
        %v1092 = vrot.slane %v904, 1
        %v1093 = vrot.slane %v945, 1
        %v1094 = vsel %vm1079, %v1092, %v1093
        %v1095 = vrot.slane %v905, 1
        %v1096 = vrot.slane %v946, 1
        %v1097 = vsel %vm1079, %v1095, %v1096
        %v1098 = vrot.slane %v906, 1
        %v1099 = vrot.slane %v947, 1
        %v1100 = vsel %vm1079, %v1098, %v1099
        %v1101 = vrot.slane %v907, 1
        %v1102 = vrot.slane %v948, 1
        %v1103 = vsel %vm1079, %v1101, %v1102
        %1104 = vrot.lane.b32.xlu0 %v1082, 64
        %v1105 = vpop.permute.xlu0 %1104
        %1106 = vrot.lane.b32.xlu0 %v1085, 64
        %v1107 = vpop.permute.xlu0 %1106
        %1108 = vrot.lane.b32.xlu0 %v1088, 64
        %v1109 = vpop.permute.xlu0 %1108
        %1110 = vrot.lane.b32.xlu0 %v1091, 64
        %v1111 = vpop.permute.xlu0 %1110
        %1112 = vrot.lane.b32.xlu0 %v1094, 64
        %v1113 = vpop.permute.xlu0 %1112
        %1114 = vrot.lane.b32.xlu0 %v1097, 64
        %v1115 = vpop.permute.xlu0 %1114
        %1116 = vrot.lane.b32.xlu0 %v1100, 64
        %v1117 = vpop.permute.xlu0 %1116
        %1118 = vrot.lane.b32.xlu0 %v1103, 64
        %v1119 = vpop.permute.xlu0 %1118
        %vm1128 = vcmask 785920
        %1129 = vst.msk [vmem:[#allocation3] sm:$0xff] %vm1128, %v1105
        %1130 = vst.msk [vmem:[#allocation3 + $0x18] sm:$0xff] %vm1128, %v1107
        %1131 = vst.msk [vmem:[#allocation3 + $0x30] sm:$0xff] %vm1128, %v1109
        %1132 = vst.msk [vmem:[#allocation3 + $0x48] sm:$0xff] %vm1128, %v1111
        %1133 = vst.msk [vmem:[#allocation3 + $0x60] sm:$0xff] %vm1128, %v1113
        %1134 = vst.msk [vmem:[#allocation3 + $0x78] sm:$0xff] %vm1128, %v1115
        %1135 = vst.msk [vmem:[#allocation3 + $0x90] sm:$0xff] %vm1128, %v1117
        %1136 = vst.msk [vmem:[#allocation3 + $0xa8] sm:$0xff] %vm1128, %v1119
        %v1139 = vunpack.c.l.b16 %v862
        %v1140 = vunpack.c.l.b16 %v863
        %v1141 = vpack.c.b16 %v1140, %v1139
        %1142 = vrot.lane.b32.xlu0 %v901, 96
        %v1143 = vpop.permute.xlu0 %1142
        %1144 = vrot.lane.b32.xlu0 %v902, 96
        %v1145 = vpop.permute.xlu0 %1144
        %1146 = vrot.lane.b32.xlu0 %v903, 96
        %v1147 = vpop.permute.xlu0 %1146
        %1148 = vrot.lane.b32.xlu0 %v904, 96
        %v1149 = vpop.permute.xlu0 %1148
        %1150 = vrot.lane.b32.xlu0 %v905, 96
        %v1151 = vpop.permute.xlu0 %1150
        %1152 = vrot.lane.b32.xlu0 %v906, 96
        %v1153 = vpop.permute.xlu0 %1152
        %1154 = vrot.lane.b32.xlu0 %v907, 96
        %v1155 = vpop.permute.xlu0 %1154
        %1156 = vrot.lane.b32.xlu0 %v1141, 96
        %v1157 = vpop.permute.xlu0 %1156
        %vm1166 = vcmask 1048320
        %1167 = vst.msk [vmem:[#allocation3] sm:$0xff] %vm1166, %v1143
        %1168 = vst.msk [vmem:[#allocation3 + $0x18] sm:$0xff] %vm1166, %v1145
        %1169 = vst.msk [vmem:[#allocation3 + $0x30] sm:$0xff] %vm1166, %v1147
        %1170 = vst.msk [vmem:[#allocation3 + $0x48] sm:$0xff] %vm1166, %v1149
        %1171 = vst.msk [vmem:[#allocation3 + $0x60] sm:$0xff] %vm1166, %v1151
        %1172 = vst.msk [vmem:[#allocation3 + $0x78] sm:$0xff] %vm1166, %v1153
        %1173 = vst.msk [vmem:[#allocation3 + $0x90] sm:$0xff] %vm1166, %v1155
        %1174 = vst.msk [vmem:[#allocation3 + $0xa8] sm:$0xff] %vm1166, %v1157
        %v1176 = vunpack.c.l.b16 %v864
        %v1177 = vpack.c.b16 %v1176, %v1176
        %v1179 = vshrl.u32 %v1141, 16
        %v1181 = vshll.u32 %v1141, 16
        %v1183 = vrot.slane %v1181, 1
        %v1184 = vor.u32 %v1179, %v1183
        %v1186 = vshll.u32 %v1177, 16
        %v1188 = vrot.slane %v1186, 1
        %v1189 = vsel %vm949, %v1184, %v1188
        %1198 = vst.msk [vmem:[#allocation3 + $0x8] sm:$0xff] %vm916, %v973
        %1199 = vst.msk [vmem:[#allocation3 + $0x20] sm:$0xff] %vm916, %v985
        %1200 = vst.msk [vmem:[#allocation3 + $0x38] sm:$0xff] %vm916, %v997
        %1201 = vst.msk [vmem:[#allocation3 + $0x50] sm:$0xff] %vm916, %v1009
        %1202 = vst.msk [vmem:[#allocation3 + $0x68] sm:$0xff] %vm916, %v1021
        %1203 = vst.msk [vmem:[#allocation3 + $0x80] sm:$0xff] %vm916, %v1033
        %1204 = vst.msk [vmem:[#allocation3 + $0x98] sm:$0xff] %vm916, %v1045
        %1205 = vst.msk [vmem:[#allocation3 + $0xb0] sm:$0xff] %vm916, %v1189
        %v1206 = vrot.slane %v1141, 1
        %v1207 = vrot.slane %v1177, 1
        %v1208 = vsel %vm1079, %v1206, %v1207
        %1209 = vrot.lane.b32.xlu0 %v1085, 32
        %v1210 = vpop.permute.xlu0 %1209
        %1211 = vrot.lane.b32.xlu0 %v1088, 32
        %v1212 = vpop.permute.xlu0 %1211
        %1213 = vrot.lane.b32.xlu0 %v1091, 32
        %v1214 = vpop.permute.xlu0 %1213
        %1215 = vrot.lane.b32.xlu0 %v1094, 32
        %v1216 = vpop.permute.xlu0 %1215
        %1217 = vrot.lane.b32.xlu0 %v1097, 32
        %v1218 = vpop.permute.xlu0 %1217
        %1219 = vrot.lane.b32.xlu0 %v1100, 32
        %v1220 = vpop.permute.xlu0 %1219
        %1221 = vrot.lane.b32.xlu0 %v1103, 32
        %v1222 = vpop.permute.xlu0 %1221
        %1223 = vrot.lane.b32.xlu0 %v1208, 32
        %v1224 = vpop.permute.xlu0 %1223
        %1233 = vst.msk [vmem:[#allocation3 + $0x8] sm:$0xff] %vm1070, %v1210
        %1234 = vst.msk [vmem:[#allocation3 + $0x20] sm:$0xff] %vm1070, %v1212
        %1235 = vst.msk [vmem:[#allocation3 + $0x38] sm:$0xff] %vm1070, %v1214
        %1236 = vst.msk [vmem:[#allocation3 + $0x50] sm:$0xff] %vm1070, %v1216
        %1237 = vst.msk [vmem:[#allocation3 + $0x68] sm:$0xff] %vm1070, %v1218
        %1238 = vst.msk [vmem:[#allocation3 + $0x80] sm:$0xff] %vm1070, %v1220
        %1239 = vst.msk [vmem:[#allocation3 + $0x98] sm:$0xff] %vm1070, %v1222
        %1240 = vst.msk [vmem:[#allocation3 + $0xb0] sm:$0xff] %vm1070, %v1224
        %v1243 = vunpack.c.l.b16 %v865
        %v1244 = vunpack.c.l.b16 %v866
        %v1245 = vpack.c.b16 %v1244, %v1243
        %1246 = vrot.lane.b32.xlu0 %v902, 64
        %v1247 = vpop.permute.xlu0 %1246
        %1248 = vrot.lane.b32.xlu0 %v903, 64
        %v1249 = vpop.permute.xlu0 %1248
        %1250 = vrot.lane.b32.xlu0 %v904, 64
        %v1251 = vpop.permute.xlu0 %1250
        %1252 = vrot.lane.b32.xlu0 %v905, 64
        %v1253 = vpop.permute.xlu0 %1252
        %1254 = vrot.lane.b32.xlu0 %v906, 64
        %v1255 = vpop.permute.xlu0 %1254
        %1256 = vrot.lane.b32.xlu0 %v907, 64
        %v1257 = vpop.permute.xlu0 %1256
        %1258 = vrot.lane.b32.xlu0 %v1141, 64
        %v1259 = vpop.permute.xlu0 %1258
        %1260 = vrot.lane.b32.xlu0 %v1245, 64
        %v1261 = vpop.permute.xlu0 %1260
        %1270 = vst.msk [vmem:[#allocation3 + $0x8] sm:$0xff] %vm1128, %v1247
        %1271 = vst.msk [vmem:[#allocation3 + $0x20] sm:$0xff] %vm1128, %v1249
        %1272 = vst.msk [vmem:[#allocation3 + $0x38] sm:$0xff] %vm1128, %v1251
        %1273 = vst.msk [vmem:[#allocation3 + $0x50] sm:$0xff] %vm1128, %v1253
        %1274 = vst.msk [vmem:[#allocation3 + $0x68] sm:$0xff] %vm1128, %v1255
        %1275 = vst.msk [vmem:[#allocation3 + $0x80] sm:$0xff] %vm1128, %v1257
        %1276 = vst.msk [vmem:[#allocation3 + $0x98] sm:$0xff] %vm1128, %v1259
        %1277 = vst.msk [vmem:[#allocation3 + $0xb0] sm:$0xff] %vm1128, %v1261
        %v1279 = vunpack.c.l.b16 %v867
        %v1280 = vpack.c.b16 %v1279, %v1279
        %v1282 = vshrl.u32 %v1245, 16
        %v1284 = vshll.u32 %v1245, 16
        %v1286 = vrot.slane %v1284, 1
        %v1287 = vor.u32 %v1282, %v1286
        %v1289 = vshll.u32 %v1280, 16
        %v1291 = vrot.slane %v1289, 1
        %v1292 = vsel %vm949, %v1287, %v1291
        %1293 = vrot.lane.b32.xlu0 %v985, 96
        %v1294 = vpop.permute.xlu0 %1293
        %1295 = vrot.lane.b32.xlu0 %v997, 96
        %v1296 = vpop.permute.xlu0 %1295
        %1297 = vrot.lane.b32.xlu0 %v1009, 96
        %v1298 = vpop.permute.xlu0 %1297
        %1299 = vrot.lane.b32.xlu0 %v1021, 96
        %v1300 = vpop.permute.xlu0 %1299
        %1301 = vrot.lane.b32.xlu0 %v1033, 96
        %v1302 = vpop.permute.xlu0 %1301
        %1303 = vrot.lane.b32.xlu0 %v1045, 96
        %v1304 = vpop.permute.xlu0 %1303
        %1305 = vrot.lane.b32.xlu0 %v1189, 96
        %v1306 = vpop.permute.xlu0 %1305
        %1307 = vrot.lane.b32.xlu0 %v1292, 96
        %v1308 = vpop.permute.xlu0 %1307
        %1317 = vst.msk [vmem:[#allocation3 + $0x8] sm:$0xff] %vm1166, %v1294
        %1318 = vst.msk [vmem:[#allocation3 + $0x20] sm:$0xff] %vm1166, %v1296
        %1319 = vst.msk [vmem:[#allocation3 + $0x38] sm:$0xff] %vm1166, %v1298
        %1320 = vst.msk [vmem:[#allocation3 + $0x50] sm:$0xff] %vm1166, %v1300
        %1321 = vst.msk [vmem:[#allocation3 + $0x68] sm:$0xff] %vm1166, %v1302
        %1322 = vst.msk [vmem:[#allocation3 + $0x80] sm:$0xff] %vm1166, %v1304
        %1323 = vst.msk [vmem:[#allocation3 + $0x98] sm:$0xff] %vm1166, %v1306
        %1324 = vst.msk [vmem:[#allocation3 + $0xb0] sm:$0xff] %vm1166, %v1308
        %v1325 = vrot.slane %v1245, 1
        %v1326 = vrot.slane %v1280, 1
        %v1327 = vsel %vm1079, %v1325, %v1326
        %1336 = vst.msk [vmem:[#allocation3 + $0x10] sm:$0xff] %vm916, %v1088
        %1337 = vst.msk [vmem:[#allocation3 + $0x28] sm:$0xff] %vm916, %v1091
        %1338 = vst.msk [vmem:[#allocation3 + $0x40] sm:$0xff] %vm916, %v1094
        %1339 = vst.msk [vmem:[#allocation3 + $0x58] sm:$0xff] %vm916, %v1097
        %1340 = vst.msk [vmem:[#allocation3 + $0x70] sm:$0xff] %vm916, %v1100
        %1341 = vst.msk [vmem:[#allocation3 + $0x88] sm:$0xff] %vm916, %v1103
        %1342 = vst.msk [vmem:[#allocation3 + $0xa0] sm:$0xff] %vm916, %v1208
        %1343 = vst.msk [vmem:[#allocation3 + $0xb8] sm:$0xff] %vm916, %v1327
        %v1344 = vld [vmem:[#allocation3] sm:$0xff]
        %v1345 = vld [vmem:[#allocation3 + $0x8] sm:$0xff]
        %v1346 = vld [vmem:[#allocation3 + $0x10] sm:$0xff]
        %v1347 = vld [vmem:[#allocation3 + $0x18] sm:$0xff]
        %v1348 = vld [vmem:[#allocation3 + $0x20] sm:$0xff]
        %v1349 = vld [vmem:[#allocation3 + $0x28] sm:$0xff]
        %v1350 = vld [vmem:[#allocation3 + $0x30] sm:$0xff]
        %v1351 = vld [vmem:[#allocation3 + $0x38] sm:$0xff]
        %v1352 = vld [vmem:[#allocation3 + $0x40] sm:$0xff]
        %v1353 = vld [vmem:[#allocation3 + $0x48] sm:$0xff]
        %v1354 = vld [vmem:[#allocation3 + $0x50] sm:$0xff]
        %v1355 = vld [vmem:[#allocation3 + $0x58] sm:$0xff]
        %v1356 = vld [vmem:[#allocation3 + $0x60] sm:$0xff]
        %v1357 = vld [vmem:[#allocation3 + $0x68] sm:$0xff]
        %v1358 = vld [vmem:[#allocation3 + $0x70] sm:$0xff]
        %v1359 = vld [vmem:[#allocation3 + $0x78] sm:$0xff]
        %v1360 = vld [vmem:[#allocation3 + $0x80] sm:$0xff]
        %v1361 = vld [vmem:[#allocation3 + $0x88] sm:$0xff]
        %v1362 = vld [vmem:[#allocation3 + $0x90] sm:$0xff]
        %v1363 = vld [vmem:[#allocation3 + $0x98] sm:$0xff]
        %v1364 = vld [vmem:[#allocation3 + $0xa0] sm:$0xff]
        %v1365 = vld [vmem:[#allocation3 + $0xa8] sm:$0xff]
        %v1366 = vld [vmem:[#allocation3 + $0xb0] sm:$0xff]
        %v1367 = vld [vmem:[#allocation3 + $0xb8] sm:$0xff]
        %v1368 = vld [vmem:[%s1] sm:$0xf]
        %v1369 = vld [vmem:[%s1 + $0x4] sm:$0xf]
        %v1370 = vld [vmem:[%s1 + $0x8] sm:$0xf]
        %v1371 = vld [vmem:[%s1 + $0xc] sm:$0xf]
        %v1372 = vld [vmem:[%s1 + $0x10] sm:$0xf]
        %v1373 = vld [vmem:[%s1 + $0x14] sm:$0xf]
        %v1374 = vld [vmem:[%s1 + $0x18] sm:$0xf]
        %v1375 = vld [vmem:[%s1 + $0x1c] sm:$0xf]
        %v1376 = vld [vmem:[%s1 + $0x20] sm:$0xf]
        %v1377 = vld [vmem:[%s1 + $0x24] sm:$0xf]
        %v1378 = vld [vmem:[%s1 + $0x28] sm:$0xf]
        %v1379 = vld [vmem:[%s1 + $0x2c] sm:$0xf]
        %v1380 = vld [vmem:[%s1 + $0x30] sm:$0xf]
        %v1381 = vld [vmem:[%s1 + $0x34] sm:$0xf]
        %v1382 = vld [vmem:[%s1 + $0x38] sm:$0xf]
        %v1383 = vld [vmem:[%s1 + $0x3c] sm:$0xf]
        %v1384 = vld [vmem:[%s1 + $0x40] sm:$0xf]
        %v1385 = vld [vmem:[%s1 + $0x44] sm:$0xf]
        %v1386 = vld [vmem:[%s1 + $0x48] sm:$0xf]
        %v1387 = vld [vmem:[%s1 + $0x4c] sm:$0xf]
        %v1388 = vld [vmem:[%s1 + $0x50] sm:$0xf]
        %v1389 = vld [vmem:[%s1 + $0x54] sm:$0xf]
        %v1390 = vld [vmem:[%s1 + $0x58] sm:$0xf]
        %v1391 = vld [vmem:[%s1 + $0x5c] sm:$0xf]
        %v1392 = vld [vmem:[%s1 + $0x60] sm:$0xf]
        %v1393 = vld [vmem:[%s1 + $0x64] sm:$0xf]
        %v1394 = vld [vmem:[%s1 + $0x68] sm:$0xf]
        %v1395 = vld [vmem:[%s1 + $0x6c] sm:$0xf]
        %v1396 = vld [vmem:[%s1 + $0x70] sm:$0xf]
        %v1397 = vld [vmem:[%s1 + $0x74] sm:$0xf]
        %v1398 = vld [vmem:[%s1 + $0x78] sm:$0xf]
        %v1399 = vld [vmem:[%s1 + $0x7c] sm:$0xf]
        %v1400 = vld [vmem:[%s1 + $0x80] sm:$0xf]
        %v1401 = vld [vmem:[%s1 + $0x84] sm:$0xf]
        %v1402 = vld [vmem:[%s1 + $0x88] sm:$0xf]
        %v1403 = vld [vmem:[%s1 + $0x8c] sm:$0xf]
        %v1404 = vld [vmem:[%s2] sm:$0x1]
        %v1406 = vlaneseq
        %v1407 = vshrl.u32 %v1406, 7
        %v1408 = vsub.s32 0, %v1407
        %v1409 = vrot.slane %v1404, %v1408
        %v1447 = vunpack.c.l.b16 %v1368
        %v1448 = vunpack.c.l.b16 %v1369
        %v1449 = vunpack.c.l.b16 %v1370
        %v1450 = vunpack.c.l.b16 %v1371
        %v1451 = vunpack.c.l.b16 %v1372
        %v1452 = vunpack.c.l.b16 %v1373
        %v1453 = vunpack.c.l.b16 %v1374
        %v1454 = vunpack.c.l.b16 %v1375
        %v1455 = vunpack.c.l.b16 %v1376
        %v1456 = vunpack.c.l.b16 %v1377
        %v1457 = vunpack.c.l.b16 %v1378
        %v1458 = vunpack.c.l.b16 %v1379
        %v1459 = vunpack.c.l.b16 %v1380
        %v1460 = vunpack.c.l.b16 %v1381
        %v1461 = vunpack.c.l.b16 %v1382
        %v1462 = vunpack.c.l.b16 %v1383
        %v1463 = vunpack.c.l.b16 %v1384
        %v1464 = vunpack.c.l.b16 %v1385
        %v1465 = vunpack.c.l.b16 %v1386
        %v1466 = vunpack.c.l.b16 %v1387
        %v1467 = vunpack.c.l.b16 %v1388
        %v1468 = vunpack.c.l.b16 %v1389
        %v1469 = vunpack.c.l.b16 %v1390
        %v1470 = vunpack.c.l.b16 %v1391
        %v1471 = vunpack.c.l.b16 %v1392
        %v1472 = vunpack.c.l.b16 %v1393
        %v1473 = vunpack.c.l.b16 %v1394
        %v1474 = vunpack.c.l.b16 %v1395
        %v1475 = vunpack.c.l.b16 %v1396
        %v1476 = vunpack.c.l.b16 %v1397
        %v1477 = vunpack.c.l.b16 %v1398
        %v1478 = vunpack.c.l.b16 %v1399
        %v1479 = vunpack.c.l.b16 %v1400
        %v1480 = vunpack.c.l.b16 %v1401
        %v1481 = vunpack.c.l.b16 %v1402
        %v1482 = vunpack.c.l.b16 %v1403
        %v1483 = vpack.c.b16 %v1448, %v1447
        %v1484 = vpack.c.b16 %v1450, %v1449
        %v1485 = vpack.c.b16 %v1452, %v1451
        %v1486 = vpack.c.b16 %v1454, %v1453
        %v1487 = vpack.c.b16 %v1456, %v1455
        %v1488 = vpack.c.b16 %v1458, %v1457
        %v1489 = vpack.c.b16 %v1460, %v1459
        %v1490 = vpack.c.b16 %v1462, %v1461
        %v1491 = vpack.c.b16 %v1464, %v1463
        %v1492 = vpack.c.b16 %v1466, %v1465
        %v1493 = vpack.c.b16 %v1468, %v1467
        %v1494 = vpack.c.b16 %v1470, %v1469
        %v1495 = vpack.c.b16 %v1472, %v1471
        %v1496 = vpack.c.b16 %v1474, %v1473
        %v1497 = vpack.c.b16 %v1476, %v1475
        %v1498 = vpack.c.b16 %v1478, %v1477
        %v1499 = vpack.c.b16 %v1480, %v1479
        %v1500 = vpack.c.b16 %v1482, %v1481
        %v1520 = vsel %vm916, %v1346, 0
        %v1523 = vsel %vm916, %v1349, 0
        %v1526 = vsel %vm916, %v1352, 0
        %v1529 = vsel %vm916, %v1355, 0
        %v1532 = vsel %vm916, %v1358, 0
        %v1535 = vsel %vm916, %v1361, 0
        %v1538 = vsel %vm916, %v1364, 0
        %v1541 = vsel %vm916, %v1367, 0
        %1543 = vmatprep.subr.bf16.mxu0 0
        %1544 = vmatpush1.bf16.msra.mxu0 %v1483
        %1545 = vmatprep.subr.bf16.mxu0 0
        %1546 = vmatpush1.bf16.msra.mxu0 %v1484
        %1547 = vmatprep.subr.bf16.mxu0 0
        %1548 = vmatpush1.bf16.msra.mxu0 %v1485
        %1549 = vmatprep.subr.bf16.mxu0 0
        %1550 = vmatpush1.bf16.msra.mxu0 %v1486
        %1551 = vmatprep.subr.bf16.mxu0 0
        %1552 = vmatpush1.bf16.msra.mxu0 %v1487
        %1553 = vmatprep.subr.bf16.mxu0 0
        %1554 = vmatpush1.bf16.msra.mxu0 %v1488
        %1555 = vmatprep.subr.bf16.mxu0 0
        %1556 = vmatpush1.bf16.msra.mxu0 %v1489
        %1557 = vmatprep.subr.bf16.mxu0 0
        %1558 = vmatpush1.bf16.msra.mxu0 %v1490
        %1559 = vmatprep.subr.bf16.mxu0 0
        %1560 = vmatpush1.bf16.msra.mxu0 %v1491
        %1561 = vmatprep.subr.bf16.mxu0 0
        %1562 = vmatpush1.bf16.msra.mxu0 %v1492
        %1563 = vmatprep.subr.bf16.mxu0 0
        %1564 = vmatpush1.bf16.msra.mxu0 %v1493
        %1565 = vmatprep.subr.bf16.mxu0 0
        %1566 = vmatpush1.bf16.msra.mxu0 %v1494
        %1567 = vmatprep.subr.bf16.mxu0 0
        %1568 = vmatpush1.bf16.msra.mxu0 %v1495
        %1569 = vmatprep.subr.bf16.mxu0 0
        %1570 = vmatpush1.bf16.msra.mxu0 %v1496
        %1571 = vmatprep.subr.bf16.mxu0 0
        %1572 = vmatpush1.bf16.msra.mxu0 %v1497
        %1573 = vmatprep.subr.bf16.mxu0 0
        %1574 = vmatpush1.bf16.msra.mxu0 %v1498
        %1575 = vmatprep.mubr.bf16.mxu0 %v1345
        %1576 = vmatmul.mubr.bf16.gmra.mrb[0].mxu0 %v1344
        %v1577 = vpop.f32.mrb[0].mxu0
        %v1578 = vadd.f32 %v1409, %v1577
        %v1579 = vpop.f32.mrb[0].mxu0
        %v1580 = vpop.f32.mrb[0].mxu0
        %v1581 = vadd.f32 %v1409, %v1580
        %v1582 = vpop.f32.mrb[0].mxu0
        %1583 = vmatprep.mubr.bf16.mxu0 %v1348
        %1584 = vmatmul.mubr.bf16.gmra.mrb[0].mxu0 %v1347
        %v1585 = vpop.f32.mrb[0].mxu0
        %v1586 = vadd.f32 %v1409, %v1585
        %v1587 = vpop.f32.mrb[0].mxu0
        %v1588 = vpop.f32.mrb[0].mxu0
        %v1589 = vadd.f32 %v1409, %v1588
        %v1590 = vpop.f32.mrb[0].mxu0
        %1591 = vmatprep.mubr.bf16.mxu0 %v1351
        %1592 = vmatmul.mubr.bf16.gmra.mrb[0].mxu0 %v1350
        %v1593 = vpop.f32.mrb[0].mxu0
        %v1594 = vadd.f32 %v1409, %v1593
        %v1595 = vpop.f32.mrb[0].mxu0
        %v1596 = vpop.f32.mrb[0].mxu0
        %v1597 = vadd.f32 %v1409, %v1596
        %v1598 = vpop.f32.mrb[0].mxu0
        %1599 = vmatprep.mubr.bf16.mxu0 %v1354
        %1600 = vmatmul.mubr.bf16.gmra.mrb[0].mxu0 %v1353
        %v1601 = vpop.f32.mrb[0].mxu0
        %v1602 = vadd.f32 %v1409, %v1601
        %v1603 = vpop.f32.mrb[0].mxu0
        %v1604 = vpop.f32.mrb[0].mxu0
        %v1605 = vadd.f32 %v1409, %v1604
        %v1606 = vpop.f32.mrb[0].mxu0
        %1607 = vmatprep.mubr.bf16.mxu0 %v1357
        %1608 = vmatmul.mubr.bf16.gmra.mrb[0].mxu0 %v1356
        %v1609 = vpop.f32.mrb[0].mxu0
        %v1610 = vadd.f32 %v1409, %v1609
        %v1611 = vpop.f32.mrb[0].mxu0
        %v1612 = vpop.f32.mrb[0].mxu0
        %v1613 = vadd.f32 %v1409, %v1612
        %v1614 = vpop.f32.mrb[0].mxu0
        %1615 = vmatprep.mubr.bf16.mxu0 %v1360
        %1616 = vmatmul.mubr.bf16.gmra.mrb[0].mxu0 %v1359
        %v1617 = vpop.f32.mrb[0].mxu0
        %v1618 = vadd.f32 %v1409, %v1617
        %v1619 = vpop.f32.mrb[0].mxu0
        %v1620 = vpop.f32.mrb[0].mxu0
        %v1621 = vadd.f32 %v1409, %v1620
        %v1622 = vpop.f32.mrb[0].mxu0
        %1623 = vmatprep.mubr.bf16.mxu0 %v1363
        %1624 = vmatmul.mubr.bf16.gmra.mrb[0].mxu0 %v1362
        %v1625 = vpop.f32.mrb[0].mxu0
        %v1626 = vadd.f32 %v1409, %v1625
        %v1627 = vpop.f32.mrb[0].mxu0
        %v1628 = vpop.f32.mrb[0].mxu0
        %v1629 = vadd.f32 %v1409, %v1628
        %v1630 = vpop.f32.mrb[0].mxu0
        %1631 = vmatprep.mubr.bf16.mxu0 %v1366
        %1632 = vmatmul.mubr.bf16.gmra.mrb[0].mxu0 %v1365
        %v1633 = vpop.f32.mrb[0].mxu0
        %v1634 = vadd.f32 %v1409, %v1633
        %v1635 = vpop.f32.mrb[0].mxu0
        %v1636 = vpop.f32.mrb[0].mxu0
        %v1637 = vadd.f32 %v1409, %v1636
        %v1638 = vpop.f32.mrb[0].mxu0
        %1639 = vdwg.mxu0
        %1640 = vmatprep.subr.bf16.mxu0 0
        %1641 = vmatpush1.bf16.msra.mxu0 %v1499
        %1642 = vmatprep.subr.bf16.mxu0 0
        %1643 = vmatpush1.bf16.msra.mxu0 %v1500
        %1644 = vmatprep.subr.bf16.mxu0 0
        %1645 = vmatpush1.bf16.msra.mxu0 0
        %1646 = vmatprep.subr.bf16.mxu0 0
        %1647 = vmatpush1.bf16.msra.mxu0 0
        %1648 = vmatprep.subr.bf16.mxu0 0
        %1649 = vmatpush1.bf16.msra.mxu0 0
        %1650 = vmatprep.subr.bf16.mxu0 0
        %1651 = vmatpush1.bf16.msra.mxu0 0
        %1652 = vmatprep.subr.bf16.mxu0 0
        %1653 = vmatpush1.bf16.msra.mxu0 0
        %1654 = vmatprep.subr.bf16.mxu0 0
        %1655 = vmatpush1.bf16.msra.mxu0 0
        %1656 = vmatprep.subr.bf16.mxu0 0
        %1657 = vmatpush1.bf16.msra.mxu0 0
        %1658 = vmatprep.subr.bf16.mxu0 0
        %1659 = vmatpush1.bf16.msra.mxu0 0
        %1660 = vmatprep.subr.bf16.mxu0 0
        %1661 = vmatpush1.bf16.msra.mxu0 0
        %1662 = vmatprep.subr.bf16.mxu0 0
        %1663 = vmatpush1.bf16.msra.mxu0 0
        %1664 = vmatprep.subr.bf16.mxu0 0
        %1665 = vmatpush1.bf16.msra.mxu0 0
        %1666 = vmatprep.subr.bf16.mxu0 0
        %1667 = vmatpush1.bf16.msra.mxu0 0
        %1668 = vmatprep.subr.bf16.mxu0 0
        %1669 = vmatpush1.bf16.msra.mxu0 0
        %1670 = vmatprep.subr.bf16.mxu0 0
        %1671 = vmatpush1.bf16.msra.mxu0 0
        %1672 = vmatprep.mubr.bf16.mxu0 0
        %1673 = vmatmul.mubr.bf16.gmra.mrb[0].mxu0 %v1520
        %v1674 = vpop.f32.mrb[0].mxu0
        %v1675 = vadd.f32 %v1578, %v1674
        %v1676 = vpop.f32.mrb[0].mxu0
        %v1677 = vpop.f32.mrb[0].mxu0
        %v1678 = vadd.f32 %v1581, %v1677
        %v1679 = vpop.f32.mrb[0].mxu0
        %1680 = vmatprep.mubr.bf16.mxu0 0
        %1681 = vmatmul.mubr.bf16.gmra.mrb[0].mxu0 %v1523
        %v1682 = vpop.f32.mrb[0].mxu0
        %v1683 = vadd.f32 %v1586, %v1682
        %v1684 = vpop.f32.mrb[0].mxu0
        %v1685 = vpop.f32.mrb[0].mxu0
        %v1686 = vadd.f32 %v1589, %v1685
        %v1687 = vpop.f32.mrb[0].mxu0
        %1688 = vmatprep.mubr.bf16.mxu0 0
        %1689 = vmatmul.mubr.bf16.gmra.mrb[0].mxu0 %v1526
        %v1690 = vpop.f32.mrb[0].mxu0
        %v1691 = vadd.f32 %v1594, %v1690
        %v1692 = vpop.f32.mrb[0].mxu0
        %v1693 = vpop.f32.mrb[0].mxu0
        %v1694 = vadd.f32 %v1597, %v1693
        %v1695 = vpop.f32.mrb[0].mxu0
        %1696 = vmatprep.mubr.bf16.mxu0 0
        %1697 = vmatmul.mubr.bf16.gmra.mrb[0].mxu0 %v1529
        %v1698 = vpop.f32.mrb[0].mxu0
        %v1699 = vadd.f32 %v1602, %v1698
        %v1700 = vpop.f32.mrb[0].mxu0
        %v1701 = vpop.f32.mrb[0].mxu0
        %v1702 = vadd.f32 %v1605, %v1701
        %v1703 = vpop.f32.mrb[0].mxu0
        %1704 = vmatprep.mubr.bf16.mxu0 0
        %1705 = vmatmul.mubr.bf16.gmra.mrb[0].mxu0 %v1532
        %v1706 = vpop.f32.mrb[0].mxu0
        %v1707 = vadd.f32 %v1610, %v1706
        %v1708 = vpop.f32.mrb[0].mxu0
        %v1709 = vpop.f32.mrb[0].mxu0
        %v1710 = vadd.f32 %v1613, %v1709
        %v1711 = vpop.f32.mrb[0].mxu0
        %1712 = vmatprep.mubr.bf16.mxu0 0
        %1713 = vmatmul.mubr.bf16.gmra.mrb[0].mxu0 %v1535
        %v1714 = vpop.f32.mrb[0].mxu0
        %v1715 = vadd.f32 %v1618, %v1714
        %v1716 = vpop.f32.mrb[0].mxu0
        %v1717 = vpop.f32.mrb[0].mxu0
        %v1718 = vadd.f32 %v1621, %v1717
        %v1719 = vpop.f32.mrb[0].mxu0
        %1720 = vmatprep.mubr.bf16.mxu0 0
        %1721 = vmatmul.mubr.bf16.gmra.mrb[0].mxu0 %v1538
        %v1722 = vpop.f32.mrb[0].mxu0
        %v1723 = vadd.f32 %v1626, %v1722
        %v1724 = vpop.f32.mrb[0].mxu0
        %v1725 = vpop.f32.mrb[0].mxu0
        %v1726 = vadd.f32 %v1629, %v1725
        %v1727 = vpop.f32.mrb[0].mxu0
        %1728 = vmatprep.mubr.bf16.mxu0 0
        %1729 = vmatmul.mubr.bf16.gmra.mrb[0].mxu0 %v1541
        %v1730 = vpop.f32.mrb[0].mxu0
        %v1731 = vadd.f32 %v1634, %v1730
        %v1732 = vpop.f32.mrb[0].mxu0
        %v1733 = vpop.f32.mrb[0].mxu0
        %v1734 = vadd.f32 %v1637, %v1733
        %v1735 = vpop.f32.mrb[0].mxu0
        %1736 = vdwg.mxu0
        %v1737 = vmax.f32 %v1675, 0.0
        %v1738 = vmax.f32 %v1678, 0.0
        %v1739 = vmax.f32 %v1683, 0.0
        %v1740 = vmax.f32 %v1686, 0.0
        %v1741 = vmax.f32 %v1691, 0.0
        %v1742 = vmax.f32 %v1694, 0.0
        %v1743 = vmax.f32 %v1699, 0.0
        %v1744 = vmax.f32 %v1702, 0.0
        %v1745 = vmax.f32 %v1707, 0.0
        %v1746 = vmax.f32 %v1710, 0.0
        %v1747 = vmax.f32 %v1715, 0.0
        %v1748 = vmax.f32 %v1718, 0.0
        %v1749 = vmax.f32 %v1723, 0.0
        %v1750 = vmax.f32 %v1726, 0.0
        %v1751 = vmax.f32 %v1731, 0.0
        %v1752 = vmax.f32 %v1734, 0.0
        %1753 = vst.msk [vmem:[%s202] sm:$0xff] %vm916, %v1737
        %1754 = vst.msk [vmem:[%s202 + $0x8] sm:$0xff] %vm916, %v1738
        %1755 = vst.msk [vmem:[%s202 + $0x10] sm:$0xff] %vm916, %v1739
        %1756 = vst.msk [vmem:[%s202 + $0x18] sm:$0xff] %vm916, %v1740
        %1757 = vst.msk [vmem:[%s202 + $0x20] sm:$0xff] %vm916, %v1741
        %1758 = vst.msk [vmem:[%s202 + $0x28] sm:$0xff] %vm916, %v1742
        %1759 = vst.msk [vmem:[%s202 + $0x30] sm:$0xff] %vm916, %v1743
        %1760 = vst.msk [vmem:[%s202 + $0x38] sm:$0xff] %vm916, %v1744
        %1761 = vst.msk [vmem:[%s202 + $0x40] sm:$0xff] %vm916, %v1745
        %1762 = vst.msk [vmem:[%s202 + $0x48] sm:$0xff] %vm916, %v1746
        %1763 = vst.msk [vmem:[%s202 + $0x50] sm:$0xff] %vm916, %v1747
        %1764 = vst.msk [vmem:[%s202 + $0x58] sm:$0xff] %vm916, %v1748
        %1765 = vst.msk [vmem:[%s202 + $0x60] sm:$0xff] %vm916, %v1749
        %1766 = vst.msk [vmem:[%s202 + $0x68] sm:$0xff] %vm916, %v1750
        %1767 = vst.msk [vmem:[%s202 + $0x70] sm:$0xff] %vm916, %v1751
        %1768 = vst.msk [vmem:[%s202 + $0x78] sm:$0xff] %vm916, %v1752
        %s1769 = sand.u32 %s110, 1
        %s1770 = scalar_lea.sflag [#allocation6], %s1769
        %s1771 = sand.u32 %s110, 1
        %s1772 = smul.addr %s1771, 128
        %s1773 = scalar_lea.vmem [#allocation7], %s1772
        // Predicated region
        $region41: #{tpu_custom_call.1} parent=31 // pred_check
          %p1774 = pneg %p120
        $region42: #{tpu_custom_call.1} parent=31 // pred_check_branch
          %1776 = sbr.rel (%p1774) target = $region44
        $region43: #{tpu_custom_call.1} parent=31 // pred_region
          %s1777 = smul.u32 8, %s25
          %s1779 = ssub.s32 2048, 2048
          %1780 = vsyncadd %s1770, %s1779
          %s1781 = smul.addr %s1777, 2
          %s1782 = smul.addr %s24, 32
          %s1783 = sadd.s32 %s1781, %s1782
          %s1784 = smul.addr %s1783, 128
          %s1785 = scalar_lea.hbm %s3, %s1784
          %s1786 = sshll.u32 %s1773, 4
          %s1787 = int_to_ptr.vmem [resolvable:$true] %s1786
          %1792 = dma.vmem_to_hbm [thread:$0]  %s1787, 2048, %s1785, %s1770, 128, 128, 8
        $region44: #{tpu_custom_call.1} parent=31 // pred_fallthru
          _
      $region32: #{tpu_custom_call.1} parent=5 // pred_fallthru
        _
      %p1793 = scmp.le.s32.totalorder 2, %s15
      // Predicated region
      $region45: #{tpu_custom_call.1} parent=5 // pred_check
        %p1794 = pneg %p1793
      $region46: #{tpu_custom_call.1} parent=5 // pred_check_branch
        %1796 = sbr.rel (%p1794) target = $region48
      $region47: #{tpu_custom_call.1} parent=5 // pred_region
        %s1797 = ssub.s32 %s15, 2
        // Predicated region
        $region49: #{tpu_custom_call.1} parent=47 // pred_check
          %p1798 = pneg %p126
        $region50: #{tpu_custom_call.1} parent=47 // pred_check_branch
          %1800 = sbr.rel (%p1798) target = $region52
        $region51: #{tpu_custom_call.1} parent=47 // pred_region
          %s1801 = sand.u32 %s111, 1
          %s1802 = scalar_lea.sflag [#allocation6], %s1801
          %s1803 = sand.u32 %s111, 1
          %s1804 = smul.addr %s1803, 128
          %s1805 = scalar_lea.vmem [#allocation7], %s1804
          %1806 = dma.done %s1802, 2048
        $region52: #{tpu_custom_call.1} parent=47 // pred_fallthru
          _
      $region48: #{tpu_custom_call.1} parent=5 // pred_fallthru
        _
    $region6: #{tpu_custom_call.1} parent=1 // loop_footer
      %s19 = sadd.s32 1, %s15
    $region7: #{tpu_custom_call.1} parent=1 // loop_footer_branch
      %14 = sbr.rel target = $region3
    $region8: #{tpu_custom_call.1} parent=1 // loop_exit
      _
    %1807 = vsyncpa [#allocation5], 1
    %s1808 = scalar_lea.sflag [#allocation5], 1
    %1809 = vsyncpa %s1808, 1
    %1810 = vsyncpa [#allocation6], 1
    %s1811 = scalar_lea.sflag [#allocation6], 1
    %1812 = vsyncpa %s1811, 1

</llo_original>
